<compile_context>
chip_gen: v6e
topology: v6e:2x2x1
jax: 0.10.0
libtpu: 0.0.40
codegen_flags: <defaults>
</compile_context>

<pallas_src>
import functools

import jax
import jax.numpy as jnp
import numpy as np
from jax.experimental import pallas as pl
from jax.experimental.pallas import tpu as pltpu


# ----------------------------- kernels ----------------------------------------


def _coord_logits_kernel(x_ref, w1_ref, b1_ref, w2_ref, b2_ref, out_ref):
    """Logits for one coordinate tile: two lane-dense MXU matmuls.

    x_ref:   (B, D)           input batch (same block every grid step)
    w1_ref:  (D, TC*H)        layer-1 weights, tile's coords folded into lanes
    b1_ref:  (1, TC*H)
    w2_ref:  (1, TC*H, TC*K)  per-tile block-diagonal layer-2 weights
    b2_ref:  (1, TC*K)
    out_ref: (B, TC*K)        logits for every coordinate in the tile
    """
    w2 = w2_ref[0]                                           # (TC*H, TC*K)
    h = jnp.maximum(
        jnp.dot(x_ref[...], w1_ref[...],
                preferred_element_type=jnp.float32) + b1_ref[...], 0.0)
    out_ref[...] = (
        jnp.dot(h.astype(w2.dtype), w2, preferred_element_type=jnp.float32)
        + b2_ref[...])


def _ce_minmax_kernel(logits_ref, y_ref, out_ref, *, batch, eps):
    """Per-coordinate softmax-CE losses + fused min-max normalisation.

    logits_ref: (B, nC, K) f32
    y_ref:      (B, 1, K)  f32 one-hot targets
    out_ref:    (1, nC, 1) f32 normalised losses
    """
    l = logits_ref[...]
    y = y_ref[...]

    # Exact per-coordinate log-softmax (per-group max stabiliser).
    m = jnp.max(l, axis=-1, keepdims=True)                              # (B,nC,1)
    lse = m + jnp.log(jnp.sum(jnp.exp(l - m), axis=-1, keepdims=True))  # (B,nC,1)
    # TODO(synk): strict one-hot targets assumed (rows of y sum to 1).
    tgt = jnp.sum(l * y, axis=-1, keepdims=True)                        # (B,nC,1)

    # mean over the batch; 1/B folded at trace time (no scalar divide).
    losses = jnp.sum(lse - tgt, axis=0, keepdims=True) * (1.0 / batch)  # (1,nC,1)

    # Fused min-max normalisation (reciprocal on the EUP slot).
    lmin = jnp.min(losses, keepdims=True)
    lmax = jnp.max(losses, keepdims=True)
    out_ref[...] = (losses - lmin) * pl.reciprocal(lmax - lmin + eps, approx=True)


# ----------------------------- wrapper -----------------------------------------


@functools.partial(
    jax.jit, static_argnames=("dims", "eps", "coord_tile", "compute_dtype"))
def loss_landscape_observer(coord_abs, x, y_onehot, dims, eps=1e-6,
                            coord_tile=32, compute_dtype=jnp.float32):
    """Pallas implementation of LossLandscapeObserver.forward.

    coord_abs: (n_params, n_coord) f32   -- PyTorch layout
    x:         (B, D_in) f32
    y_onehot:  (B, K) f32
    dims:      (D_in, H, K) optimizee architecture
    returns:   (n_coord,) f32 normalized losses
    """
    d_in, h_dim, k_dim = dims
    n_params, n_coord = coord_abs.shape
    assert n_params == d_in * h_dim + h_dim + h_dim * k_dim + k_dim
    b = x.shape[0]

    # Coordinate-tile size (keeps HBM/VMEM linear in n_coord).  For very large
    # n_coord keep TC*K and TC*H multiples of 128 to stay lane-dense/aligned.
    tc = n_coord if n_coord <= coord_tile else coord_tile
    n_tiles = -(-n_coord // tc)
    nc_pad = n_tiles * tc

    # ---- layout glue (fused under jit; eye(tc) etc. are trace-time constants)
    p = coord_abs.T.astype(jnp.float32)                                 # (nC, P)
    if nc_pad != n_coord:
        # pad with copies of coordinate 0 (does not change the min / max).
        pad = jnp.broadcast_to(p[:1], (nc_pad - n_coord, n_params))
        p = jnp.concatenate([p, pad], axis=0)

    o = 0
    w1 = p[:, o:o + d_in * h_dim].reshape(nc_pad, d_in, h_dim); o += d_in * h_dim
    b1 = p[:, o:o + h_dim].reshape(nc_pad, h_dim);              o += h_dim
    w2 = p[:, o:o + h_dim * k_dim].reshape(nc_pad, h_dim, k_dim); o += h_dim * k_dim
    b2 = p[:, o:o + k_dim].reshape(nc_pad, k_dim)

    # layer 1: coordinates folded into the lane dimension.
    w1_all = jnp.transpose(w1, (1, 0, 2)).reshape(d_in, nc_pad * h_dim)
    b1_all = b1.reshape(1, nc_pad * h_dim)

    # layer 2: block-diagonal packing PER TILE -> size linear in n_coord.
    eye_tc = jnp.eye(tc, dtype=jnp.float32)
    w2_bd = jnp.einsum(
        "tchk,cd->tchdk", w2.reshape(n_tiles, tc, h_dim, k_dim), eye_tc,
    ).reshape(n_tiles, tc * h_dim, tc * k_dim)
    b2_all = b2.reshape(1, nc_pad * k_dim)

    x_c = x.astype(compute_dtype)
    w1_all = w1_all.astype(compute_dtype)
    w2_bd = w2_bd.astype(compute_dtype)

    # ---- kernel 1: per-coordinate-tile logits (gridded, megacore-parallel) ----
    logits = pl.pallas_call(
        _coord_logits_kernel,
        out_shape=jax.ShapeDtypeStruct((b, nc_pad * k_dim), jnp.float32),
        grid=(n_tiles,),
        in_specs=[
            pl.BlockSpec((b, d_in), lambda c: (0, 0)),
            pl.BlockSpec((d_in, tc * h_dim), lambda c: (0, c)),
            pl.BlockSpec((1, tc * h_dim), lambda c: (0, c)),
            pl.BlockSpec((1, tc * h_dim, tc * k_dim), lambda c: (c, 0, 0)),
            pl.BlockSpec((1, tc * k_dim), lambda c: (0, c)),
        ],
        out_specs=pl.BlockSpec((b, tc * k_dim), lambda c: (0, c)),
        compiler_params=pltpu.CompilerParams(
            dimension_semantics=("parallel",)),      # v7x: shard tiles over 2 TCs
        # NOTE: if the w2-tile DMA ever shows up as exposed latency, add
        # pipeline_mode=pl.Buffered(3) to its BlockSpec (re-check VMEM on v7x).
    )(x_c, w1_all, b1_all, w2_bd, b2_all)

    # ---- kernel 2: tiny epilogue — per-coordinate CE + min-max normalisation ----
    logits3 = logits.reshape(b, nc_pad, k_dim)                 # XLA reshape, fused
    y3 = y_onehot.astype(jnp.float32).reshape(b, 1, k_dim)
    normed = pl.pallas_call(
        functools.partial(_ce_minmax_kernel, batch=b, eps=eps),
        out_shape=jax.ShapeDtypeStruct((1, nc_pad, 1), jnp.float32),
    )(logits3, y3)

    return normed.reshape(nc_pad)[:n_coord]


# ----------------------------- reference (pure JAX) ----------------------------


def _reference(coord_abs, x, y_onehot, dims, eps):
    d_in, h_dim, k_dim = dims
    n_params, n_coord = coord_abs.shape
    losses = []
    for i in range(n_coord):
        pv = coord_abs[:, i]
        o = 0
        w1 = pv[o:o + d_in * h_dim].reshape(d_in, h_dim); o += d_in * h_dim
        b1 = pv[o:o + h_dim];                             o += h_dim
        w2 = pv[o:o + h_dim * k_dim].reshape(h_dim, k_dim); o += h_dim * k_dim
        b2 = pv[o:o + k_dim]
        h = jnp.maximum(x @ w1 + b1, 0.0)
        logits = h @ w2 + b2
        logp = jax.nn.log_softmax(logits, axis=-1)
        losses.append(-jnp.sum(y_onehot * logp) / x.shape[0])
    losses = jnp.stack(losses)
    return (losses - losses.min()) / (losses.max() - losses.min() + eps)


# ----------------------------- main --------------------------------------------


if __name__ == "__main__":
    # Small shapes implied by the forward: coordinate columns, each a flat
    # parameter vector of a tiny MLP optimizee.  coord_tile=16 -> 2 grid tiles
    # so the tiled/parallel path is actually exercised.
    B, D_IN, H, K = 8, 16, 32, 8
    N_COORD = 32
    N_PARAMS = D_IN * H + H + H * K + K        # 808
    EPS = 1e-6

    key = jax.random.PRNGKey(0)
    k_coord, k_x, k_y = jax.random.split(key, 3)

    coord_abs = jax.random.normal(k_coord, (N_PARAMS, N_COORD), dtype=jnp.float32) * 0.1
    x = jax.random.normal(k_x, (B, D_IN), dtype=jnp.float32)
    labels = jax.random.randint(k_y, (B,), 0, K)
    y_onehot = jax.nn.one_hot(labels, K, dtype=jnp.float32)

    out = loss_landscape_observer(coord_abs, x, y_onehot,
                                  dims=(D_IN, H, K), eps=EPS, coord_tile=16)
    out = jax.block_until_ready(out)

    ref = jax.block_until_ready(_reference(coord_abs, x, y_onehot, (D_IN, H, K), EPS))
    assert out.shape == (N_COORD,)
    assert np.allclose(np.asarray(out), np.asarray(ref), atol=1e-3, rtol=1e-3), (
        f"mismatch: max abs diff {np.max(np.abs(np.asarray(out) - np.asarray(ref)))}")

    print("KERNEL_OK")
</pallas_src>

<mosaic_0001>
module attributes {stable_mosaic.version = 11 : i64} {
  func.func @_coord_logits_kernel(%arg0: i32, %arg1: memref<8x16xf32, #tpu.memory_space<vmem>>, %arg2: memref<16x512xf32, #tpu.memory_space<vmem>>, %arg3: memref<1x512xf32, #tpu.memory_space<vmem>>, %arg4: memref<1x512x128xf32, #tpu.memory_space<vmem>>, %arg5: memref<1x128xf32, #tpu.memory_space<vmem>>, %arg6: memref<8x128xf32, #tpu.memory_space<vmem>>) attributes {dimension_semantics = [#tpu.dimension_semantics<parallel>], iteration_bounds = array<i64: 2>, scalar_prefetch = 0 : i64, scratch_operands = 0 : i64, tpu.core_type = #tpu.core_type<tc>, window_params = [{pipeline_mode = #tpu.pipeline_mode<synchronous>, transform_indices = @transform_0, window_bounds = array<i64: 8, 16>}, {transform_indices = @transform_1, window_bounds = array<i64: 16, 512>}, {transform_indices = @transform_2, window_bounds = array<i64: 1, 512>}, {transform_indices = @transform_3, window_bounds = array<i64: 1, 512, 128>}, {transform_indices = @transform_4, window_bounds = array<i64: 1, 128>}, {transform_indices = @transform_5, window_bounds = array<i64: 8, 128>}]} {
    %c0 = arith.constant 0 : index
    %c0_0 = arith.constant 0 : index
    %c0_1 = arith.constant 0 : index
    %0 = vector.load %arg4[%c0, %c0_0, %c0_1] : memref<1x512x128xf32, #tpu.memory_space<vmem>>, vector<1x512x128xf32>
    %1 = vector.shape_cast %0 : vector<1x512x128xf32> to vector<512x128xf32>
    %c0_2 = arith.constant 0 : index
    %c0_3 = arith.constant 0 : index
    %2 = vector.load %arg1[%c0_2, %c0_3] : memref<8x16xf32, #tpu.memory_space<vmem>>, vector<8x16xf32>
    %c0_4 = arith.constant 0 : index
    %c0_5 = arith.constant 0 : index
    %3 = vector.load %arg2[%c0_4, %c0_5] : memref<16x512xf32, #tpu.memory_space<vmem>>, vector<16x512xf32>
    %cst = arith.constant dense<0.000000e+00> : vector<8x512xf32>
    %4 = tpu.matmul %2, %3, %cst {dimension_numbers = #tpu.dot_dimension_numbers<[1], [0], [0], [1], [0, 0, 1, 1], [], []>} : vector<8x16xf32>, vector<16x512xf32>, vector<8x512xf32> -> vector<8x512xf32>
    %c0_6 = arith.constant 0 : index
    %c0_7 = arith.constant 0 : index
    %5 = vector.load %arg3[%c0_6, %c0_7] : memref<1x512xf32, #tpu.memory_space<vmem>>, vector<1x512xf32>
    %6 = vector.broadcast %5 : vector<1x512xf32> to vector<8x512xf32>
    %7 = arith.addf %4, %6 : vector<8x512xf32>
    %cst_8 = arith.constant 0.000000e+00 : f32
    %8 = vector.broadcast %cst_8 : f32 to vector<8x512xf32>
    %9 = arith.maximumf %7, %8 : vector<8x512xf32>
    %cst_9 = arith.constant dense<0.000000e+00> : vector<8x128xf32>
    %10 = tpu.matmul %9, %1, %cst_9 {dimension_numbers = #tpu.dot_dimension_numbers<[1], [0], [0], [1], [0, 0, 1, 1], [], []>} : vector<8x512xf32>, vector<512x128xf32>, vector<8x128xf32> -> vector<8x128xf32>
    %c0_10 = arith.constant 0 : index
    %c0_11 = arith.constant 0 : index
    %11 = vector.load %arg5[%c0_10, %c0_11] : memref<1x128xf32, #tpu.memory_space<vmem>>, vector<1x128xf32>
    %12 = vector.broadcast %11 : vector<1x128xf32> to vector<8x128xf32>
    %13 = arith.addf %10, %12 : vector<8x128xf32>
    %c0_12 = arith.constant 0 : index
    %c0_13 = arith.constant 0 : index
    %14 = vector.load %arg6[%c0_12, %c0_13] : memref<8x128xf32, #tpu.memory_space<vmem>>, vector<8x128xf32>
    tpu.vector_store %arg6[%c0_12, %c0_13], %13 {strides = array<i32>} : memref<8x128xf32, #tpu.memory_space<vmem>>, vector<8x128xf32>,
    return
  }
  func.func @transform_0(%arg0: i32) -> (i32, i32) {
    %c0_i32 = arith.constant 0 : i32
    %c0_i32_0 = arith.constant 0 : i32
    %c0_i32_1 = arith.constant 0 : i32
    return %c0_i32, %c0_i32_0 : i32, i32
  }
  func.func @transform_1(%arg0: i32) -> (i32, i32) {
    %c0_i32 = arith.constant 0 : i32
    %c0_i32_0 = arith.constant 0 : i32
    return %c0_i32, %arg0 : i32, i32
  }
  func.func @transform_2(%arg0: i32) -> (i32, i32) {
    %c0_i32 = arith.constant 0 : i32
    %c0_i32_0 = arith.constant 0 : i32
    return %c0_i32, %arg0 : i32, i32
  }
  func.func @transform_3(%arg0: i32) -> (i32, i32, i32) {
    %c0_i32 = arith.constant 0 : i32
    %c0_i32_0 = arith.constant 0 : i32
    %c0_i32_1 = arith.constant 0 : i32
    return %arg0, %c0_i32, %c0_i32_0 : i32, i32, i32
  }
  func.func @transform_4(%arg0: i32) -> (i32, i32) {
    %c0_i32 = arith.constant 0 : i32
    %c0_i32_0 = arith.constant 0 : i32
    return %c0_i32, %arg0 : i32, i32
  }
  func.func @transform_5(%arg0: i32) -> (i32, i32) {
    %c0_i32 = arith.constant 0 : i32
    %c0_i32_0 = arith.constant 0 : i32
    return %c0_i32, %arg0 : i32, i32
  }
}

module attributes {stable_mosaic.version = 11 : i64} {
  func.func @_ce_minmax_kernel(%arg0: memref<8x32x8xf32, #tpu.memory_space<vmem>>, %arg1: memref<8x1x8xf32, #tpu.memory_space<vmem>>, %arg2: memref<1x32x1xf32, #tpu.memory_space<vmem>>) attributes {dimension_semantics = [], scalar_prefetch = 0 : i64, scratch_operands = 0 : i64, tpu.core_type = #tpu.core_type<tc>} {
    %c0 = arith.constant 0 : index
    %c0_0 = arith.constant 0 : index
    %c0_1 = arith.constant 0 : index
    %0 = vector.load %arg0[%c0, %c0_0, %c0_1] : memref<8x32x8xf32, #tpu.memory_space<vmem>>, vector<8x32x8xf32>
    %c0_2 = arith.constant 0 : index
    %c0_3 = arith.constant 0 : index
    %c0_4 = arith.constant 0 : index
    %1 = vector.load %arg1[%c0_2, %c0_3, %c0_4] : memref<8x1x8xf32, #tpu.memory_space<vmem>>, vector<8x1x8xf32>
    %cst = arith.constant dense<0xFF800000> : vector<8x32xf32>
    %2 = vector.multi_reduction <maximumf>, %0, %cst [2] : vector<8x32x8xf32> to vector<8x32xf32>
    %3 = vector.shape_cast %2 : vector<8x32xf32> to vector<8x32x1xf32>
    %4 = vector.broadcast %3 : vector<8x32x1xf32> to vector<8x32x8xf32>
    %5 = arith.subf %0, %4 : vector<8x32x8xf32>
    %6 = math.exp %5 : vector<8x32x8xf32>
    %cst_5 = arith.constant dense<0.000000e+00> : vector<8x32xf32>
    %7 = vector.multi_reduction <add>, %6, %cst_5 [2] : vector<8x32x8xf32> to vector<8x32xf32>
    %8 = vector.shape_cast %7 : vector<8x32xf32> to vector<8x32x1xf32>
    %9 = math.log %8 : vector<8x32x1xf32>
    %10 = arith.addf %3, %9 : vector<8x32x1xf32>
    %11 = vector.broadcast %1 : vector<8x1x8xf32> to vector<8x32x8xf32>
    %12 = arith.mulf %0, %11 : vector<8x32x8xf32>
    %cst_6 = arith.constant dense<0.000000e+00> : vector<8x32xf32>
    %13 = vector.multi_reduction <add>, %12, %cst_6 [2] : vector<8x32x8xf32> to vector<8x32xf32>
    %14 = vector.shape_cast %13 : vector<8x32xf32> to vector<8x32x1xf32>
    %15 = arith.subf %10, %14 : vector<8x32x1xf32>
    %cst_7 = arith.constant dense<0.000000e+00> : vector<32x1xf32>
    %16 = vector.multi_reduction <add>, %15, %cst_7 [0] : vector<8x32x1xf32> to vector<32x1xf32>
    %17 = vector.shape_cast %16 : vector<32x1xf32> to vector<1x32x1xf32>
    %cst_8 = arith.constant 1.250000e-01 : f32
    %18 = vector.broadcast %cst_8 : f32 to vector<1x32x1xf32>
    %19 = arith.mulf %17, %18 : vector<1x32x1xf32>
    %20 = vector.shape_cast %19 : vector<1x32x1xf32> to vector<1x1x32x1xf32>
    %cst_9 = arith.constant dense<0x7F800000> : vector<1xf32>
    %21 = vector.multi_reduction <minimumf>, %20, %cst_9 [1, 2, 3] : vector<1x1x32x1xf32> to vector<1xf32>
    %22 = vector.shape_cast %21 : vector<1xf32> to vector<1x1x1x1xf32>
    %23 = vector.extract %22[0, 0, 0, 0] : f32 from vector<1x1x1x1xf32>
    %24 = vector.broadcast %23 : f32 to vector<1x1x1xf32>
    %25 = vector.shape_cast %19 : vector<1x32x1xf32> to vector<1x1x32x1xf32>
    %cst_10 = arith.constant dense<0xFF800000> : vector<1xf32>
    %26 = vector.multi_reduction <maximumf>, %25, %cst_10 [1, 2, 3] : vector<1x1x32x1xf32> to vector<1xf32>
    %27 = vector.shape_cast %26 : vector<1xf32> to vector<1x1x1x1xf32>
    %28 = vector.extract %27[0, 0, 0, 0] : f32 from vector<1x1x1x1xf32>
    %29 = vector.broadcast %28 : f32 to vector<1x1x1xf32>
    %30 = vector.broadcast %24 : vector<1x1x1xf32> to vector<1x32x1xf32>
    %31 = arith.subf %19, %30 : vector<1x32x1xf32>
    %32 = arith.subf %29, %24 : vector<1x1x1xf32>
    %cst_11 = arith.constant 9.99999997E-7 : f32
    %33 = vector.broadcast %cst_11 : f32 to vector<1x1x1xf32>
    %34 = arith.addf %32, %33 : vector<1x1x1xf32>
    %35 = tpu.reciprocal %34 {approx = true} : vector<1x1x1xf32> -> vector<1x1x1xf32>
    %36 = vector.broadcast %35 : vector<1x1x1xf32> to vector<1x32x1xf32>
    %37 = arith.mulf %31, %36 : vector<1x32x1xf32>
    %c0_12 = arith.constant 0 : index
    %c0_13 = arith.constant 0 : index
    %c0_14 = arith.constant 0 : index
    %38 = vector.load %arg2[%c0_12, %c0_13, %c0_14] : memref<1x32x1xf32, #tpu.memory_space<vmem>>, vector<1x32x1xf32>
    tpu.vector_store %arg2[%c0_12, %c0_13, %c0_14], %37 {strides = array<i32>} : memref<1x32x1xf32, #tpu.memory_space<vmem>>, vector<1x32x1xf32>,
    return
  }
}

</mosaic_0001>

<llo_original>
// kernel: loss_landscape_observer.2
$region0: #{loss_landscape_observer.2}
  #allocation0 [shape = 'u32[]', space=smem, size = 0x4, offset = 0x4, fixed_abs, tag = 'smem constant byte address 0x4 - core index']
  #allocation1 [shape = 'u32[144,128]{1,0:T(1,128)}', space=vmem, size = 0x12000, scoped, tag = 'internal scratch']
  %s0 = inlined_call_operand.vmem [shape: f32[8,16], index: 0, kind: input, shape index: {}]
  %s1 = inlined_call_operand.vmem [shape: f32[16,1024], index: 1, kind: input, shape index: {}]
  %s2 = inlined_call_operand.vmem [shape: f32[1,1024], index: 2, kind: input, shape index: {}]
  %s3 = inlined_call_operand.vmem [shape: f32[2,512,128], index: 3, kind: input, shape index: {}]
  %s4 = inlined_call_operand.vmem [shape: f32[1,256], index: 4, kind: input, shape index: {}]
  %s5 = inlined_call_operand.vmem [shape: f32[8,256], index: 5, kind: output, shape index: {}]
  %s6 = sld [smem:[#allocation0]]
  $region76: #{loss_landscape_observer.2} parent=0
    _
  %s8 = ssub.s32 1, %s6
  %s9 = scalar_select 0, %s8, %s6
  $region1: #{loss_landscape_observer.2} parent=0
    #allocation2 [shape = 'u8[65536]{0}', space=vmem, size = 0x10000, scoped, tag = 'input window, operand 1']
    loop: start=0, step=1, limit=4
    $region2: #{loss_landscape_observer.2} parent=1 // loop_pre_header
      _
    $region3: #{loss_landscape_observer.2} parent=1 // loop_header
      %s11 = sphi 0, %s15
      %p12 = scmp.ge.s32.totalorder %s11, 4
      %s19 = sphi 0, %s19
      %s21 = sphi 0, %s19
      %s22 = sphi 0, %s21
      %s36 = sphi 0, %s22
      %s42 = sphi 0, %s44
      %s45 = sphi 0, %s42
      %s46 = sphi 0, %s45
      %s62 = sphi 0, %s46
      %s68 = sphi 0, %s70
      %s71 = sphi 0, %s68
      %s72 = sphi 0, %s71
      %s88 = sphi 0, %s72
      %s94 = sphi 0, %s96
      %s97 = sphi 0, %s94
      %s98 = sphi 0, %s97
      %s114 = sphi 0, %s98
      %s120 = sphi 0, %s122
      %s123 = sphi 0, %s120
      %s124 = sphi 0, %s123
      %s140 = sphi 0, %s124
      %s146 = sphi 0, %s148
      %s149 = sphi 0, %s146
      %s150 = sphi 0, %s149
      %s166 = sphi 0, %s150
    $region4: #{loss_landscape_observer.2} parent=1 // loop_header_branch
      %14 = sbr.rel (%p12) target = $region8
    $region5: #{loss_landscape_observer.2} parent=1 // loop_body
      %s16 = ssub.s32 %s11, 1
      %s17 = ssub.s32 %s11, 2
      %s18 = sadd.s32 %s11, 1
      %s20 = sadd.s32 %s19, 1
      %p23 = scmp.eq.s32.totalorder %s11, 1
      %p24 = scmp.ne.s32.totalorder %s19, %s21
      %p25 = scmp.eq.s32.totalorder %s11, 0
      %p26 = por %p24, %p25
      %p27 = scmp.ne.s32.totalorder %s19, %s21
      %p28 = scmp.eq.s32.totalorder %s16, 1
      %p29 = por %p27, %p28
      %p30 = scmp.ne.s32.totalorder %s21, %s22
      %p31 = scmp.eq.s32.totalorder %s16, 0
      %p32 = por %p30, %p31
      %p33 = scmp.ne.s32.totalorder %s21, %s22
      %p34 = scmp.eq.s32.totalorder %s17, 1
      %p35 = por %p33, %p34
      %p37 = scmp.ne.s32.totalorder %s22, %s36
      %p38 = scmp.eq.s32.totalorder %s17, 0
      %p39 = por %p37, %p38
      %s40 = ssub.s32 %s11, %s18
      %p41 = scmp.eq.s32.totalorder %s40, 0
      %s43 = sadd.s32 %s42, 1
      %s44 = scalar_select %p41, %s42, %s43
      %p47 = pneg %p41
      %p48 = scmp.eq.s32.totalorder %s11, 1
      %p49 = por %p47, %p48
      %p50 = scmp.ne.s32.totalorder %s42, %s45
      %p51 = scmp.eq.s32.totalorder %s11, 0
      %p52 = por %p50, %p51
      %p53 = scmp.ne.s32.totalorder %s42, %s45
      %p54 = scmp.eq.s32.totalorder %s16, 1
      %p55 = por %p53, %p54
      %p56 = scmp.ne.s32.totalorder %s45, %s46
      %p57 = scmp.eq.s32.totalorder %s16, 0
      %p58 = por %p56, %p57
      %p59 = scmp.ne.s32.totalorder %s45, %s46
      %p60 = scmp.eq.s32.totalorder %s17, 1
      %p61 = por %p59, %p60
      %p63 = scmp.ne.s32.totalorder %s46, %s62
      %p64 = scmp.eq.s32.totalorder %s17, 0
      %p65 = por %p63, %p64
      %s66 = ssub.s32 %s11, %s18
      %p67 = scmp.eq.s32.totalorder %s66, 0
      %s69 = sadd.s32 %s68, 1
      %s70 = scalar_select %p67, %s68, %s69
      %p73 = pneg %p67
      %p74 = scmp.eq.s32.totalorder %s11, 1
      %p75 = por %p73, %p74
      %p76 = scmp.ne.s32.totalorder %s68, %s71
      %p77 = scmp.eq.s32.totalorder %s11, 0
      %p78 = por %p76, %p77
      %p79 = scmp.ne.s32.totalorder %s68, %s71
      %p80 = scmp.eq.s32.totalorder %s16, 1
      %p81 = por %p79, %p80
      %p82 = scmp.ne.s32.totalorder %s71, %s72
      %p83 = scmp.eq.s32.totalorder %s16, 0
      %p84 = por %p82, %p83
      %p85 = scmp.ne.s32.totalorder %s71, %s72
      %p86 = scmp.eq.s32.totalorder %s17, 1
      %p87 = por %p85, %p86
      %p89 = scmp.ne.s32.totalorder %s72, %s88
      %p90 = scmp.eq.s32.totalorder %s17, 0
      %p91 = por %p89, %p90
      %s92 = ssub.s32 %s11, %s18
      %p93 = scmp.eq.s32.totalorder %s92, 0
      %s95 = sadd.s32 %s94, 1
      %s96 = scalar_select %p93, %s94, %s95
      %p99 = pneg %p93
      %p100 = scmp.eq.s32.totalorder %s11, 1
      %p101 = por %p99, %p100
      %p102 = scmp.ne.s32.totalorder %s94, %s97
      %p103 = scmp.eq.s32.totalorder %s11, 0
      %p104 = por %p102, %p103
      %p105 = scmp.ne.s32.totalorder %s94, %s97
      %p106 = scmp.eq.s32.totalorder %s16, 1
      %p107 = por %p105, %p106
      %p108 = scmp.ne.s32.totalorder %s97, %s98
      %p109 = scmp.eq.s32.totalorder %s16, 0
      %p110 = por %p108, %p109
      %p111 = scmp.ne.s32.totalorder %s97, %s98
      %p112 = scmp.eq.s32.totalorder %s17, 1
      %p113 = por %p111, %p112
      %p115 = scmp.ne.s32.totalorder %s98, %s114
      %p116 = scmp.eq.s32.totalorder %s17, 0
      %p117 = por %p115, %p116
      %s118 = ssub.s32 %s11, %s18
      %p119 = scmp.eq.s32.totalorder %s118, 0
      %s121 = sadd.s32 %s120, 1
      %s122 = scalar_select %p119, %s120, %s121
      %p125 = pneg %p119
      %p126 = scmp.eq.s32.totalorder %s11, 1
      %p127 = por %p125, %p126
      %p128 = scmp.ne.s32.totalorder %s120, %s123
      %p129 = scmp.eq.s32.totalorder %s11, 0
      %p130 = por %p128, %p129
      %p131 = scmp.ne.s32.totalorder %s120, %s123
      %p132 = scmp.eq.s32.totalorder %s16, 1
      %p133 = por %p131, %p132
      %p134 = scmp.ne.s32.totalorder %s123, %s124
      %p135 = scmp.eq.s32.totalorder %s16, 0
      %p136 = por %p134, %p135
      %p137 = scmp.ne.s32.totalorder %s123, %s124
      %p138 = scmp.eq.s32.totalorder %s17, 1
      %p139 = por %p137, %p138
      %p141 = scmp.ne.s32.totalorder %s124, %s140
      %p142 = scmp.eq.s32.totalorder %s17, 0
      %p143 = por %p141, %p142
      %s144 = ssub.s32 %s11, %s18
      %p145 = scmp.eq.s32.totalorder %s144, 0
      %s147 = sadd.s32 %s146, 1
      %s148 = scalar_select %p145, %s146, %s147
      %p151 = pneg %p145
      %p152 = scmp.eq.s32.totalorder %s11, 1
      %p153 = por %p151, %p152
      %p154 = scmp.ne.s32.totalorder %s146, %s149
      %p155 = scmp.eq.s32.totalorder %s11, 0
      %p156 = por %p154, %p155
      %p157 = scmp.ne.s32.totalorder %s146, %s149
      %p158 = scmp.eq.s32.totalorder %s16, 1
      %p159 = por %p157, %p158
      %p160 = scmp.ne.s32.totalorder %s149, %s150
      %p161 = scmp.eq.s32.totalorder %s16, 0
      %p162 = por %p160, %p161
      %p163 = scmp.ne.s32.totalorder %s149, %s150
      %p164 = scmp.eq.s32.totalorder %s17, 1
      %p165 = por %p163, %p164
      %p167 = scmp.ne.s32.totalorder %s150, %s166
      %p168 = scmp.eq.s32.totalorder %s17, 0
      %p169 = por %p167, %p168
      %p170 = scmp.le.s32.totalorder 1, %s11
      %p171 = scmp.lt.s32.totalorder %s11, 3
      %p172 = pnand %p170, %p171
      %p173 = pneg %p172
      // Predicated region
      $region9: #{loss_landscape_observer.2} parent=5 // pred_check
        _
      $region10: #{loss_landscape_observer.2} parent=5 // pred_check_branch
        %175 = sbr.rel (%p172) target = $region12
      $region11: #{loss_landscape_observer.2} parent=5 // pred_region
        %s176 = ssub.s32 %s11, 1
        // Predicated region
        $region13: #{loss_landscape_observer.2} parent=11 // pred_check
          %p177 = pneg %p32
        $region14: #{loss_landscape_observer.2} parent=11 // pred_check_branch
          %179 = sbr.rel (%p177) target = $region16
        $region15: #{loss_landscape_observer.2} parent=11 // pred_region
          _
        $region16: #{loss_landscape_observer.2} parent=11 // pred_fallthru
          _
      $region12: #{loss_landscape_observer.2} parent=5 // pred_fallthru
        _
      %p180 = scmp.lt.s32.totalorder %s11, 2
      // Predicated region
      $region17: #{loss_landscape_observer.2} parent=5 // pred_check
        %p181 = pneg %p180
      $region18: #{loss_landscape_observer.2} parent=5 // pred_check_branch
        %183 = sbr.rel (%p181) target = $region20
      $region19: #{loss_landscape_observer.2} parent=5 // pred_region
        // Predicated region
        $region21: #{loss_landscape_observer.2} parent=19 // pred_check
          %p184 = pneg %p52
        $region22: #{loss_landscape_observer.2} parent=19 // pred_check_branch
          %186 = sbr.rel (%p184) target = $region24
        $region23: #{loss_landscape_observer.2} parent=19 // pred_region
          %s187 = sand.u32 %s42, 1
          %s188 = sand.u32 %s42, 1
          %s189 = smul.addr %s188, 64
          %s190 = scalar_lea.vmem [#allocation2], %s189
          %s191 = smul.u32 4, %s11
          %s192 = smul.addr %s191, 8
          %s193 = scalar_lea.vmem %s1, %s192
          // Predicated region
          $region25: #{loss_landscape_observer.2} parent=23 // pred_check
            _
          $region26: #{loss_landscape_observer.2} parent=23 // pred_check_branch
            %195 = sbr.rel (0) target = $region28
          $region27: #{loss_landscape_observer.2} parent=23 // pred_region
            // Predicated region
            $region29: #{loss_landscape_observer.2} parent=27 // pred_check
              _
            $region30: #{loss_landscape_observer.2} parent=27 // pred_check_branch
              %197 = sbr.rel (0) target = $region32
            $region31: #{loss_landscape_observer.2} parent=27 // pred_region
              loop: start=0, step=1, limit=1
              $region33: #{loss_landscape_observer.2} parent=31 // loop_pre_header
                _
              $region34: #{loss_landscape_observer.2} parent=31 // loop_header
                %s199 = sphi 0, %s203
                %p200 = scmp.ge.s32.totalorder %s199, 1
                %s204 = sphi %s193, %s193
                %s205 = sphi %s190, %s190
              $region35: #{loss_landscape_observer.2} parent=31 // loop_header_branch
                %202 = sbr.rel (%p200) target = $region39
              $region36: #{loss_landscape_observer.2} parent=31 // loop_body
                %v206 = vld [vmem:[%s204] sm:$0xff]
                %207 = vst [vmem:[%s205] sm:$0xff] %v206
                %v208 = vld [vmem:[%s204 + $0x8] sm:$0xff]
                %209 = vst [vmem:[%s205 + $0x8] sm:$0xff] %v208
                %v210 = vld [vmem:[%s204 + $0x10] sm:$0xff]
                %211 = vst [vmem:[%s205 + $0x10] sm:$0xff] %v210
                %v212 = vld [vmem:[%s204 + $0x18] sm:$0xff]
                %213 = vst [vmem:[%s205 + $0x18] sm:$0xff] %v212
                %v214 = vld [vmem:[%s204 + $0x40] sm:$0xff]
                %215 = vst [vmem:[%s205 + $0x20] sm:$0xff] %v214
                %v216 = vld [vmem:[%s204 + $0x48] sm:$0xff]
                %217 = vst [vmem:[%s205 + $0x28] sm:$0xff] %v216
                %v218 = vld [vmem:[%s204 + $0x50] sm:$0xff]
                %219 = vst [vmem:[%s205 + $0x30] sm:$0xff] %v218
                %v220 = vld [vmem:[%s204 + $0x58] sm:$0xff]
                %221 = vst [vmem:[%s205 + $0x38] sm:$0xff] %v220
              $region37: #{loss_landscape_observer.2} parent=31 // loop_footer
                %s203 = sadd.s32 1, %s199
              $region38: #{loss_landscape_observer.2} parent=31 // loop_footer_branch
                %198 = sbr.rel target = $region34
              $region39: #{loss_landscape_observer.2} parent=31 // loop_exit
                _
            $region32: #{loss_landscape_observer.2} parent=27 // pred_fallthru
              _
            // Predicated region
            $region40: #{loss_landscape_observer.2} parent=27 // pred_check
              _
            $region41: #{loss_landscape_observer.2} parent=27 // pred_check_branch
              %223 = sbr.rel target = $region43
            $region42: #{loss_landscape_observer.2} parent=27 // pred_region
              _
            $region43: #{loss_landscape_observer.2} parent=27 // pred_fallthru
              _
          $region28: #{loss_landscape_observer.2} parent=23 // pred_fallthru
            _
          %224 = vnop
        $region24: #{loss_landscape_observer.2} parent=19 // pred_fallthru
          _
        // Predicated region
        $region44: #{loss_landscape_observer.2} parent=19 // pred_check
          %p225 = pneg %p78
        $region45: #{loss_landscape_observer.2} parent=19 // pred_check_branch
          %227 = sbr.rel (%p225) target = $region47
        $region46: #{loss_landscape_observer.2} parent=19 // pred_region
          %s228 = smul.u32 4, %s11
          %p229 = scmp.lt.s32.totalorder %s228, 7
          %s230 = scalar_select %p229, %s228, 7
          %s231 = scalar_lea.vmem %s2, %s230
          %s232 = smul.u32 4, %s11
        $region47: #{loss_landscape_observer.2} parent=19 // pred_fallthru
          _
        // Predicated region
        $region48: #{loss_landscape_observer.2} parent=19 // pred_check
          %p233 = pneg %p104
        $region49: #{loss_landscape_observer.2} parent=19 // pred_check_branch
          %235 = sbr.rel (%p233) target = $region51
        $region50: #{loss_landscape_observer.2} parent=19 // pred_region
          %p236 = scmp.lt.s32.totalorder %s11, 1
          %s237 = scalar_select %p236, %s11, 1
          %s238 = smul.addr %s237, 64
          %s239 = smul.addr %s238, 8
          %s240 = scalar_lea.vmem %s3, %s239
        $region51: #{loss_landscape_observer.2} parent=19 // pred_fallthru
          _
        // Predicated region
        $region52: #{loss_landscape_observer.2} parent=19 // pred_check
          %p241 = pneg %p130
        $region53: #{loss_landscape_observer.2} parent=19 // pred_check_branch
          %243 = sbr.rel (%p241) target = $region55
        $region54: #{loss_landscape_observer.2} parent=19 // pred_region
          %p244 = scmp.lt.s32.totalorder %s11, 1
          %s245 = scalar_select %p244, %s11, 1
          %s246 = scalar_lea.vmem %s4, %s245
        $region55: #{loss_landscape_observer.2} parent=19 // pred_fallthru
          _
      $region20: #{loss_landscape_observer.2} parent=5 // pred_fallthru
        _
      %p247 = scmp.le.s32.totalorder 1, %s11
      %p248 = scmp.lt.s32.totalorder %s11, 3
      %p249 = pnand %p247, %p248
      %p250 = pneg %p249
      // Predicated region
      $region56: #{loss_landscape_observer.2} parent=5 // pred_check
        _
      $region57: #{loss_landscape_observer.2} parent=5 // pred_check_branch
        %252 = sbr.rel (%p249) target = $region59
      $region58: #{loss_landscape_observer.2} parent=5 // pred_region
        %s253 = ssub.s32 %s11, 1
        %s254 = sand.u32 %s45, 1
        %s255 = sand.u32 %s45, 1
        %s256 = smul.addr %s255, 64
        %s257 = scalar_lea.vmem [#allocation2], %s256
        // Predicated region
        $region60: #{loss_landscape_observer.2} parent=58 // pred_check
          %p258 = pneg %p58
        $region61: #{loss_landscape_observer.2} parent=58 // pred_check_branch
          %260 = sbr.rel (%p258) target = $region63
        $region62: #{loss_landscape_observer.2} parent=58 // pred_region
          _
        $region63: #{loss_landscape_observer.2} parent=58 // pred_fallthru
          _
        %p261 = pneg %p32
        %p262 = pneg %p29
        %s263 = sand.u32 %s45, 1
        %s264 = sand.u32 %s45, 1
        %s265 = smul.addr %s264, 64
        %s266 = scalar_lea.vmem [#allocation2], %s265
        %p267 = pneg %p58
        %p268 = pneg %p55
        %s269 = smul.u32 4, %s16
        %p270 = scmp.lt.s32.totalorder %s269, 7
        %s271 = scalar_select %p270, %s269, 7
        %s272 = scalar_lea.vmem %s2, %s271
        %p273 = pneg %p84
        %p274 = pneg %p81
        %p275 = scmp.lt.s32.totalorder %s16, 1
        %s276 = scalar_select %p275, %s16, 1
        %s277 = smul.addr %s276, 64
        %s278 = smul.addr %s277, 8
        %s279 = scalar_lea.vmem %s3, %s278
        %p280 = pneg %p110
        %p281 = pneg %p107
        %p282 = scmp.lt.s32.totalorder %s16, 1
        %s283 = scalar_select %p282, %s16, 1
        %s284 = scalar_lea.vmem %s4, %s283
        %p285 = pneg %p136
        %p286 = pneg %p133
        %p287 = pneg %p162
        %p288 = pneg %p159
        %p289 = scmp.lt.s32.totalorder %s16, 1
        %s290 = scalar_select %p289, %s16, 1
        %s291 = smul.addr %s290, 8
        %s292 = scalar_lea.vmem %s5, %s291
        %s293 = smul.u32 4, %s16
        %s294 = smul.u32 4, %s16
        %p295 = scmp.lt.s32.totalorder %s294, 7
        %s296 = scalar_select %p295, %s294, 7
        %s297 = scalar_lea.vmem %s2, %s296
        %s298 = smul.u32 4, %s16
        %p299 = scmp.lt.s32.totalorder %s16, 1
        %s300 = scalar_select %p299, %s16, 1
        %s301 = smul.addr %s300, 64
        %s302 = smul.addr %s301, 8
        %s303 = scalar_lea.vmem %s3, %s302
        %p304 = scmp.lt.s32.totalorder %s16, 1
        %s305 = scalar_select %p304, %s16, 1
        %s306 = scalar_lea.vmem %s4, %s305
        %p307 = scmp.lt.s32.totalorder %s16, 1
        %s308 = scalar_select %p307, %s16, 1
        %s309 = smul.addr %s308, 8
        %s310 = scalar_lea.vmem %s5, %s309
        %v311 = vld [vmem:[%s303] sm:$0xff]
        %v312 = vld [vmem:[%s303 + $0x8] sm:$0xff]
        %v313 = vld [vmem:[%s303 + $0x10] sm:$0xff]
        %v314 = vld [vmem:[%s303 + $0x18] sm:$0xff]
        %v315 = vld [vmem:[%s303 + $0x20] sm:$0xff]
        %v316 = vld [vmem:[%s303 + $0x28] sm:$0xff]
        %v317 = vld [vmem:[%s303 + $0x30] sm:$0xff]
        %v318 = vld [vmem:[%s303 + $0x38] sm:$0xff]
        %v319 = vld [vmem:[%s303 + $0x40] sm:$0xff]
        %v320 = vld [vmem:[%s303 + $0x48] sm:$0xff]
        %v321 = vld [vmem:[%s303 + $0x50] sm:$0xff]
        %v322 = vld [vmem:[%s303 + $0x58] sm:$0xff]
        %v323 = vld [vmem:[%s303 + $0x60] sm:$0xff]
        %v324 = vld [vmem:[%s303 + $0x68] sm:$0xff]
        %v325 = vld [vmem:[%s303 + $0x70] sm:$0xff]
        %v326 = vld [vmem:[%s303 + $0x78] sm:$0xff]
        %v327 = vld [vmem:[%s303 + $0x80] sm:$0xff]
        %v328 = vld [vmem:[%s303 + $0x88] sm:$0xff]
        %v329 = vld [vmem:[%s303 + $0x90] sm:$0xff]
        %v330 = vld [vmem:[%s303 + $0x98] sm:$0xff]
        %v331 = vld [vmem:[%s303 + $0xa0] sm:$0xff]
        %v332 = vld [vmem:[%s303 + $0xa8] sm:$0xff]
        %v333 = vld [vmem:[%s303 + $0xb0] sm:$0xff]
        %v334 = vld [vmem:[%s303 + $0xb8] sm:$0xff]
        %v335 = vld [vmem:[%s303 + $0xc0] sm:$0xff]
        %v336 = vld [vmem:[%s303 + $0xc8] sm:$0xff]
        %v337 = vld [vmem:[%s303 + $0xd0] sm:$0xff]
        %v338 = vld [vmem:[%s303 + $0xd8] sm:$0xff]
        %v339 = vld [vmem:[%s303 + $0xe0] sm:$0xff]
        %v340 = vld [vmem:[%s303 + $0xe8] sm:$0xff]
        %v341 = vld [vmem:[%s303 + $0xf0] sm:$0xff]
        %v342 = vld [vmem:[%s303 + $0xf8] sm:$0xff]
        %v343 = vld [vmem:[%s303 + $0x100] sm:$0xff]
        %v344 = vld [vmem:[%s303 + $0x108] sm:$0xff]
        %v345 = vld [vmem:[%s303 + $0x110] sm:$0xff]
        %v346 = vld [vmem:[%s303 + $0x118] sm:$0xff]
        %v347 = vld [vmem:[%s303 + $0x120] sm:$0xff]
        %v348 = vld [vmem:[%s303 + $0x128] sm:$0xff]
        %v349 = vld [vmem:[%s303 + $0x130] sm:$0xff]
        %v350 = vld [vmem:[%s303 + $0x138] sm:$0xff]
        %v351 = vld [vmem:[%s303 + $0x140] sm:$0xff]
        %v352 = vld [vmem:[%s303 + $0x148] sm:$0xff]
        %v353 = vld [vmem:[%s303 + $0x150] sm:$0xff]
        %v354 = vld [vmem:[%s303 + $0x158] sm:$0xff]
        %v355 = vld [vmem:[%s303 + $0x160] sm:$0xff]
        %v356 = vld [vmem:[%s303 + $0x168] sm:$0xff]
        %v357 = vld [vmem:[%s303 + $0x170] sm:$0xff]
        %v358 = vld [vmem:[%s303 + $0x178] sm:$0xff]
        %v359 = vld [vmem:[%s303 + $0x180] sm:$0xff]
        %v360 = vld [vmem:[%s303 + $0x188] sm:$0xff]
        %v361 = vld [vmem:[%s303 + $0x190] sm:$0xff]
        %v362 = vld [vmem:[%s303 + $0x198] sm:$0xff]
        %v363 = vld [vmem:[%s303 + $0x1a0] sm:$0xff]
        %v364 = vld [vmem:[%s303 + $0x1a8] sm:$0xff]
        %v365 = vld [vmem:[%s303 + $0x1b0] sm:$0xff]
        %v366 = vld [vmem:[%s303 + $0x1b8] sm:$0xff]
        %v367 = vld [vmem:[%s303 + $0x1c0] sm:$0xff]
        %v368 = vld [vmem:[%s303 + $0x1c8] sm:$0xff]
        %v369 = vld [vmem:[%s303 + $0x1d0] sm:$0xff]
        %v370 = vld [vmem:[%s303 + $0x1d8] sm:$0xff]
        %v371 = vld [vmem:[%s303 + $0x1e0] sm:$0xff]
        %v372 = vld [vmem:[%s303 + $0x1e8] sm:$0xff]
        %v373 = vld [vmem:[%s303 + $0x1f0] sm:$0xff]
        %v374 = vld [vmem:[%s303 + $0x1f8] sm:$0xff]
        %v375 = vld [vmem:[%s0] sm:$0xff]
        %v376 = vld [vmem:[%s257] sm:$0xff]
        %v377 = vld [vmem:[%s257 + $0x8] sm:$0xff]
        %v378 = vld [vmem:[%s257 + $0x10] sm:$0xff]
        %v379 = vld [vmem:[%s257 + $0x18] sm:$0xff]
        %v380 = vld [vmem:[%s257 + $0x20] sm:$0xff]
        %v381 = vld [vmem:[%s257 + $0x28] sm:$0xff]
        %v382 = vld [vmem:[%s257 + $0x30] sm:$0xff]
        %v383 = vld [vmem:[%s257 + $0x38] sm:$0xff]
        %v384 = vld [vmem:[%s297] sm:$0xf]
        %v386 = vlaneseq
        %v387 = vshrl.u32 %v386, 7
        %v388 = vsub.s32 0, %v387
        %v389 = vrot.slane %v384, %v388
        %v390 = vlaneseq
        %v391 = vshrl.u32 %v390, 7
        %v392 = vsub.s32 1, %v391
        %v393 = vrot.slane %v384, %v392
        %v394 = vlaneseq
        %v395 = vshrl.u32 %v394, 7
        %v396 = vsub.s32 2, %v395
        %v397 = vrot.slane %v384, %v396
        %v398 = vlaneseq
        %v399 = vshrl.u32 %v398, 7
        %v400 = vsub.s32 3, %v399
        %v401 = vrot.slane %v384, %v400
        %vm406 = vcmask 130048
        %v408 = vsel %vm406, %v375, 0
        %410 = vmatprep.subr.mxu0 0.0
        %411 = vmatpush1.msra.mxu0 0.0
        %412 = vmatprep.subr.mxu0 0.0
        %413 = vmatpush1.msra.mxu0 0.0
        %414 = vmatprep.subr.mxu0 0.0
        %415 = vmatpush1.msra.mxu0 0.0
        %416 = vmatprep.subr.mxu0 0.0
        %417 = vmatpush1.msra.mxu0 0.0
        %418 = vmatprep.subr.mxu0 0.0
        %419 = vmatpush1.msra.mxu0 0.0
        %420 = vmatprep.subr.mxu0 0.0
        %421 = vmatpush1.msra.mxu0 0.0
        %422 = vmatprep.subr.mxu0 0.0
        %423 = vmatpush1.msra.mxu0 0.0
        %424 = vmatprep.subr.mxu0 0.0
        %425 = vmatpush1.msra.mxu0 0.0
        %426 = vmatprep.subr.mxu0 0.0
        %427 = vmatpush1.msra.mxu0 0.0
        %428 = vmatprep.subr.mxu0 0.0
        %429 = vmatpush1.msra.mxu0 0.0
        %430 = vmatprep.subr.mxu0 0.0
        %431 = vmatpush1.msra.mxu0 0.0
        %432 = vmatprep.subr.mxu0 0.0
        %433 = vmatpush1.msra.mxu0 0.0
        %434 = vmatprep.subr.mxu0 0.0
        %435 = vmatpush1.msra.mxu0 0.0
        %436 = vmatprep.subr.mxu0 0.0
        %437 = vmatpush1.msra.mxu0 0.0
        %438 = vmatprep.subr.mxu0 %v381
        %439 = vmatpush1.msra.mxu0 %v380
        %440 = vmatprep.subr.mxu0 %v377
        %441 = vmatpush1.msra.mxu0 %v376
        %442 = vmatprep.subr.mxu0 0.0
        %443 = vmatpush2.msra.mxu0 0.0
        %444 = vmatprep.subr.mxu0 0.0
        %445 = vmatpush2.msra.mxu0 0.0
        %446 = vmatprep.subr.mxu0 0.0
        %447 = vmatpush2.msra.mxu0 0.0
        %448 = vmatprep.subr.mxu0 0.0
        %449 = vmatpush2.msra.mxu0 0.0
        %450 = vmatprep.subr.mxu0 0.0
        %451 = vmatpush2.msra.mxu0 0.0
        %452 = vmatprep.subr.mxu0 0.0
        %453 = vmatpush2.msra.mxu0 0.0
        %454 = vmatprep.subr.mxu0 0.0
        %455 = vmatpush2.msra.mxu0 0.0
        %456 = vmatprep.subr.mxu0 0.0
        %457 = vmatpush2.msra.mxu0 0.0
        %458 = vmatprep.subr.mxu0 0.0
        %459 = vmatpush2.msra.mxu0 0.0
        %460 = vmatprep.subr.mxu0 0.0
        %461 = vmatpush2.msra.mxu0 0.0
        %462 = vmatprep.subr.mxu0 0.0
        %463 = vmatpush2.msra.mxu0 0.0
        %464 = vmatprep.subr.mxu0 0.0
        %465 = vmatpush2.msra.mxu0 0.0
        %466 = vmatprep.subr.mxu0 0.0
        %467 = vmatpush2.msra.mxu0 0.0
        %468 = vmatprep.subr.mxu0 0.0
        %469 = vmatpush2.msra.mxu0 0.0
        %470 = vmatprep.subr.mxu0 0.0
        %471 = vmatpush2.msra.mxu0 0.0
        %472 = vmatprep.subr.mxu0 0.0
        %473 = vmatpush2.msra.mxu0 0.0
        %474 = vmatprep.mubr.f32.mxu0 0.0
        %475 = vmatmul.mubr.f32.gmra.mxu0 %v408
        %v476 = vpop.f32.mrf.mxu0
        %v477 = vadd.f32 %v389, %v476
        %v478 = vpop.f32.mrf.mxu0
        %v479 = vadd.f32 %v393, %v478
        %480 = vdwg.mxu0
        %481 = vmatprep.subr.mxu0 0.0
        %482 = vmatpush1.msra.mxu0 0.0
        %483 = vmatprep.subr.mxu0 0.0
        %484 = vmatpush1.msra.mxu0 0.0
        %485 = vmatprep.subr.mxu0 0.0
        %486 = vmatpush1.msra.mxu0 0.0
        %487 = vmatprep.subr.mxu0 0.0
        %488 = vmatpush1.msra.mxu0 0.0
        %489 = vmatprep.subr.mxu0 0.0
        %490 = vmatpush1.msra.mxu0 0.0
        %491 = vmatprep.subr.mxu0 0.0
        %492 = vmatpush1.msra.mxu0 0.0
        %493 = vmatprep.subr.mxu0 0.0
        %494 = vmatpush1.msra.mxu0 0.0
        %495 = vmatprep.subr.mxu0 0.0
        %496 = vmatpush1.msra.mxu0 0.0
        %497 = vmatprep.subr.mxu0 0.0
        %498 = vmatpush1.msra.mxu0 0.0
        %499 = vmatprep.subr.mxu0 0.0
        %500 = vmatpush1.msra.mxu0 0.0
        %501 = vmatprep.subr.mxu0 0.0
        %502 = vmatpush1.msra.mxu0 0.0
        %503 = vmatprep.subr.mxu0 0.0
        %504 = vmatpush1.msra.mxu0 0.0
        %505 = vmatprep.subr.mxu0 0.0
        %506 = vmatpush1.msra.mxu0 0.0
        %507 = vmatprep.subr.mxu0 0.0
        %508 = vmatpush1.msra.mxu0 0.0
        %509 = vmatprep.subr.mxu0 %v383
        %510 = vmatpush1.msra.mxu0 %v382
        %511 = vmatprep.subr.mxu0 %v379
        %512 = vmatpush1.msra.mxu0 %v378
        %513 = vmatprep.subr.mxu0 0.0
        %514 = vmatpush2.msra.mxu0 0.0
        %515 = vmatprep.subr.mxu0 0.0
        %516 = vmatpush2.msra.mxu0 0.0
        %517 = vmatprep.subr.mxu0 0.0
        %518 = vmatpush2.msra.mxu0 0.0
        %519 = vmatprep.subr.mxu0 0.0
        %520 = vmatpush2.msra.mxu0 0.0
        %521 = vmatprep.subr.mxu0 0.0
        %522 = vmatpush2.msra.mxu0 0.0
        %523 = vmatprep.subr.mxu0 0.0
        %524 = vmatpush2.msra.mxu0 0.0
        %525 = vmatprep.subr.mxu0 0.0
        %526 = vmatpush2.msra.mxu0 0.0
        %527 = vmatprep.subr.mxu0 0.0
        %528 = vmatpush2.msra.mxu0 0.0
        %529 = vmatprep.subr.mxu0 0.0
        %530 = vmatpush2.msra.mxu0 0.0
        %531 = vmatprep.subr.mxu0 0.0
        %532 = vmatpush2.msra.mxu0 0.0
        %533 = vmatprep.subr.mxu0 0.0
        %534 = vmatpush2.msra.mxu0 0.0
        %535 = vmatprep.subr.mxu0 0.0
        %536 = vmatpush2.msra.mxu0 0.0
        %537 = vmatprep.subr.mxu0 0.0
        %538 = vmatpush2.msra.mxu0 0.0
        %539 = vmatprep.subr.mxu0 0.0
        %540 = vmatpush2.msra.mxu0 0.0
        %541 = vmatprep.subr.mxu0 0.0
        %542 = vmatpush2.msra.mxu0 0.0
        %543 = vmatprep.subr.mxu0 0.0
        %544 = vmatpush2.msra.mxu0 0.0
        %545 = vmatprep.mubr.f32.mxu0 0.0
        %546 = vmatmul.mubr.f32.gmra.mxu0 %v408
        %v547 = vpop.f32.mrf.mxu0
        %v548 = vadd.f32 %v397, %v547
        %v549 = vpop.f32.mrf.mxu0
        %v550 = vadd.f32 %v401, %v549
        %551 = vdwg.mxu0
        %v552 = vmax.f32 %v477, 0.0
        %v553 = vmax.f32 %v479, 0.0
        %v554 = vmax.f32 %v548, 0.0
        %v555 = vmax.f32 %v550, 0.0
        %v556 = vld [vmem:[%s306] sm:$0x1]
        %v558 = vlaneseq
        %v559 = vshrl.u32 %v558, 7
        %v560 = vsub.s32 0, %v559
        %v561 = vrot.slane %v556, %v560
        %563 = vmatprep.subr.mxu0 0.0
        %564 = vmatpush1.msra.mxu0 %v326
        %565 = vmatprep.subr.mxu0 0.0
        %566 = vmatpush1.msra.mxu0 %v325
        %567 = vmatprep.subr.mxu0 0.0
        %568 = vmatpush1.msra.mxu0 %v324
        %569 = vmatprep.subr.mxu0 0.0
        %570 = vmatpush1.msra.mxu0 %v323
        %571 = vmatprep.subr.mxu0 0.0
        %572 = vmatpush1.msra.mxu0 %v322
        %573 = vmatprep.subr.mxu0 0.0
        %574 = vmatpush1.msra.mxu0 %v321
        %575 = vmatprep.subr.mxu0 0.0
        %576 = vmatpush1.msra.mxu0 %v320
        %577 = vmatprep.subr.mxu0 0.0
        %578 = vmatpush1.msra.mxu0 %v319
        %579 = vmatprep.subr.mxu0 0.0
        %580 = vmatpush1.msra.mxu0 %v318
        %581 = vmatprep.subr.mxu0 0.0
        %582 = vmatpush1.msra.mxu0 %v317
        %583 = vmatprep.subr.mxu0 0.0
        %584 = vmatpush1.msra.mxu0 %v316
        %585 = vmatprep.subr.mxu0 0.0
        %586 = vmatpush1.msra.mxu0 %v315
        %587 = vmatprep.subr.mxu0 0.0
        %588 = vmatpush1.msra.mxu0 %v314
        %589 = vmatprep.subr.mxu0 0.0
        %590 = vmatpush1.msra.mxu0 %v313
        %591 = vmatprep.subr.mxu0 0.0
        %592 = vmatpush1.msra.mxu0 %v312
        %593 = vmatprep.subr.mxu0 0.0
        %594 = vmatpush1.msra.mxu0 %v311
        %595 = vmatprep.subr.mxu0 0.0
        %596 = vmatpush2.msra.mxu0 %v342
        %597 = vmatprep.subr.mxu0 0.0
        %598 = vmatpush2.msra.mxu0 %v341
        %599 = vmatprep.subr.mxu0 0.0
        %600 = vmatpush2.msra.mxu0 %v340
        %601 = vmatprep.subr.mxu0 0.0
        %602 = vmatpush2.msra.mxu0 %v339
        %603 = vmatprep.subr.mxu0 0.0
        %604 = vmatpush2.msra.mxu0 %v338
        %605 = vmatprep.subr.mxu0 0.0
        %606 = vmatpush2.msra.mxu0 %v337
        %607 = vmatprep.subr.mxu0 0.0
        %608 = vmatpush2.msra.mxu0 %v336
        %609 = vmatprep.subr.mxu0 0.0
        %610 = vmatpush2.msra.mxu0 %v335
        %611 = vmatprep.subr.mxu0 0.0
        %612 = vmatpush2.msra.mxu0 %v334
        %613 = vmatprep.subr.mxu0 0.0
        %614 = vmatpush2.msra.mxu0 %v333
        %615 = vmatprep.subr.mxu0 0.0
        %616 = vmatpush2.msra.mxu0 %v332
        %617 = vmatprep.subr.mxu0 0.0
        %618 = vmatpush2.msra.mxu0 %v331
        %619 = vmatprep.subr.mxu0 0.0
        %620 = vmatpush2.msra.mxu0 %v330
        %621 = vmatprep.subr.mxu0 0.0
        %622 = vmatpush2.msra.mxu0 %v329
        %623 = vmatprep.subr.mxu0 0.0
        %624 = vmatpush2.msra.mxu0 %v328
        %625 = vmatprep.subr.mxu0 0.0
        %626 = vmatpush2.msra.mxu0 %v327
        %627 = vmatprep.mubr.f32.mxu0 %v553
        %628 = vmatmul.mubr.f32.gmra.mxu0 %v552
        %v629 = vpop.f32.mrf.mxu0
        %v630 = vadd.f32 %v561, %v629
        %v631 = vpop.f32.mrf.mxu0
        %632 = vdwg.mxu0
        %633 = vmatprep.subr.mxu0 0.0
        %634 = vmatpush1.msra.mxu0 %v358
        %635 = vmatprep.subr.mxu0 0.0
        %636 = vmatpush1.msra.mxu0 %v357
        %637 = vmatprep.subr.mxu0 0.0
        %638 = vmatpush1.msra.mxu0 %v356
        %639 = vmatprep.subr.mxu0 0.0
        %640 = vmatpush1.msra.mxu0 %v355
        %641 = vmatprep.subr.mxu0 0.0
        %642 = vmatpush1.msra.mxu0 %v354
        %643 = vmatprep.subr.mxu0 0.0
        %644 = vmatpush1.msra.mxu0 %v353
        %645 = vmatprep.subr.mxu0 0.0
        %646 = vmatpush1.msra.mxu0 %v352
        %647 = vmatprep.subr.mxu0 0.0
        %648 = vmatpush1.msra.mxu0 %v351
        %649 = vmatprep.subr.mxu0 0.0
        %650 = vmatpush1.msra.mxu0 %v350
        %651 = vmatprep.subr.mxu0 0.0
        %652 = vmatpush1.msra.mxu0 %v349
        %653 = vmatprep.subr.mxu0 0.0
        %654 = vmatpush1.msra.mxu0 %v348
        %655 = vmatprep.subr.mxu0 0.0
        %656 = vmatpush1.msra.mxu0 %v347
        %657 = vmatprep.subr.mxu0 0.0
        %658 = vmatpush1.msra.mxu0 %v346
        %659 = vmatprep.subr.mxu0 0.0
        %660 = vmatpush1.msra.mxu0 %v345
        %661 = vmatprep.subr.mxu0 0.0
        %662 = vmatpush1.msra.mxu0 %v344
        %663 = vmatprep.subr.mxu0 0.0
        %664 = vmatpush1.msra.mxu0 %v343
        %665 = vmatprep.subr.mxu0 0.0
        %666 = vmatpush2.msra.mxu0 %v374
        %667 = vmatprep.subr.mxu0 0.0
        %668 = vmatpush2.msra.mxu0 %v373
        %669 = vmatprep.subr.mxu0 0.0
        %670 = vmatpush2.msra.mxu0 %v372
        %671 = vmatprep.subr.mxu0 0.0
        %672 = vmatpush2.msra.mxu0 %v371
        %673 = vmatprep.subr.mxu0 0.0
        %674 = vmatpush2.msra.mxu0 %v370
        %675 = vmatprep.subr.mxu0 0.0
        %676 = vmatpush2.msra.mxu0 %v369
        %677 = vmatprep.subr.mxu0 0.0
        %678 = vmatpush2.msra.mxu0 %v368
        %679 = vmatprep.subr.mxu0 0.0
        %680 = vmatpush2.msra.mxu0 %v367
        %681 = vmatprep.subr.mxu0 0.0
        %682 = vmatpush2.msra.mxu0 %v366
        %683 = vmatprep.subr.mxu0 0.0
        %684 = vmatpush2.msra.mxu0 %v365
        %685 = vmatprep.subr.mxu0 0.0
        %686 = vmatpush2.msra.mxu0 %v364
        %687 = vmatprep.subr.mxu0 0.0
        %688 = vmatpush2.msra.mxu0 %v363
        %689 = vmatprep.subr.mxu0 0.0
        %690 = vmatpush2.msra.mxu0 %v362
        %691 = vmatprep.subr.mxu0 0.0
        %692 = vmatpush2.msra.mxu0 %v361
        %693 = vmatprep.subr.mxu0 0.0
        %694 = vmatpush2.msra.mxu0 %v360
        %695 = vmatprep.subr.mxu0 0.0
        %696 = vmatpush2.msra.mxu0 %v359
        %697 = vmatprep.mubr.f32.mxu0 %v555
        %698 = vmatmul.mubr.f32.gmra.mxu0 %v554
        %v699 = vpop.f32.mrf.mxu0
        %v700 = vadd.f32 %v630, %v699
        %v701 = vpop.f32.mrf.mxu0
        %702 = vdwg.mxu0
        %703 = vst [vmem:[%s310] sm:$0xff] %v700
        %p704 = scmp.lt.s32.totalorder %s16, 1
        %s705 = scalar_select %p704, %s16, 1
        %s706 = smul.addr %s705, 8
        %s707 = scalar_lea.vmem %s5, %s706
        // Predicated region
        $region64: #{loss_landscape_observer.2} parent=58 // pred_check
          %p708 = pneg %p159
        $region65: #{loss_landscape_observer.2} parent=58 // pred_check_branch
          %710 = sbr.rel (%p708) target = $region67
        $region66: #{loss_landscape_observer.2} parent=58 // pred_region
          _
        $region67: #{loss_landscape_observer.2} parent=58 // pred_fallthru
          _
      $region59: #{loss_landscape_observer.2} parent=5 // pred_fallthru
        _
      %p711 = scmp.le.s32.totalorder 2, %s11
      // Predicated region
      $region68: #{loss_landscape_observer.2} parent=5 // pred_check
        %p712 = pneg %p711
      $region69: #{loss_landscape_observer.2} parent=5 // pred_check_branch
        %714 = sbr.rel (%p712) target = $region71
      $region70: #{loss_landscape_observer.2} parent=5 // pred_region
        %s715 = ssub.s32 %s11, 2
        // Predicated region
        $region72: #{loss_landscape_observer.2} parent=70 // pred_check
          %p716 = pneg %p165
        $region73: #{loss_landscape_observer.2} parent=70 // pred_check_branch
          %718 = sbr.rel (%p716) target = $region75
        $region74: #{loss_landscape_observer.2} parent=70 // pred_region
          %p719 = scmp.lt.s32.totalorder %s17, 1
          %s720 = scalar_select %p719, %s17, 1
          %s721 = smul.addr %s720, 8
          %s722 = scalar_lea.vmem %s5, %s721
        $region75: #{loss_landscape_observer.2} parent=70 // pred_fallthru
          _
      $region71: #{loss_landscape_observer.2} parent=5 // pred_fallthru
        _
    $region6: #{loss_landscape_observer.2} parent=1 // loop_footer
      %s15 = sadd.s32 1, %s11
    $region7: #{loss_landscape_observer.2} parent=1 // loop_footer_branch
      %10 = sbr.rel target = $region3
    $region8: #{loss_landscape_observer.2} parent=1 // loop_exit
      _

// kernel: loss_landscape_observer.3
$region0: #{loss_landscape_observer.3}
  #allocation0 [shape = 'u32[]', space=smem, size = 0x4, offset = 0x4, fixed_abs, tag = 'smem constant byte address 0x4 - core index']
  #allocation1 [shape = 'u32[144,128]{1,0:T(1,128)}', space=vmem, size = 0x12000, scoped, tag = 'internal scratch']
  %s0 = inlined_call_operand.vmem [shape: f32[8,32,8], index: 0, kind: input, shape index: {}]
  %s1 = inlined_call_operand.vmem [shape: f32[8,1,8], index: 1, kind: input, shape index: {}]
  %s2 = inlined_call_operand.vmem [shape: f32[1,32,1], index: 2, kind: output, shape index: {}]
  %s3 = sld [smem:[#allocation0]]
  $region18: #{loss_landscape_observer.3} parent=0
    _
  %s5 = ssub.s32 1, %s3
  %s6 = scalar_select 0, %s5, %s3
  // Predicated region
  $region2: #{loss_landscape_observer.3} parent=0 // pred_check
    _
  $region3: #{loss_landscape_observer.3} parent=0 // pred_check_branch
    %8 = sbr.rel (0) target = $region5
  $region4: #{loss_landscape_observer.3} parent=0 // pred_region
    _
  $region5: #{loss_landscape_observer.3} parent=0 // pred_fallthru
    _
  // Predicated region
  $region6: #{loss_landscape_observer.3} parent=0 // pred_check
    _
  $region7: #{loss_landscape_observer.3} parent=0 // pred_check_branch
    %10 = sbr.rel (0) target = $region9
  $region8: #{loss_landscape_observer.3} parent=0 // pred_region
    _
  $region9: #{loss_landscape_observer.3} parent=0 // pred_fallthru
    _
  %v11 = vld [vmem:[%s0] sm:$0xff]
  %v12 = vld [vmem:[%s0 + $0x8] sm:$0xff]
  %v13 = vld [vmem:[%s0 + $0x10] sm:$0xff]
  %v14 = vld [vmem:[%s0 + $0x18] sm:$0xff]
  %v15 = vld [vmem:[%s0 + $0x20] sm:$0xff]
  %v16 = vld [vmem:[%s0 + $0x28] sm:$0xff]
  %v17 = vld [vmem:[%s0 + $0x30] sm:$0xff]
  %v18 = vld [vmem:[%s0 + $0x38] sm:$0xff]
  %v19 = vld [vmem:[%s0 + $0x40] sm:$0xff]
  %v20 = vld [vmem:[%s0 + $0x48] sm:$0xff]
  %v21 = vld [vmem:[%s0 + $0x50] sm:$0xff]
  %v22 = vld [vmem:[%s0 + $0x58] sm:$0xff]
  %v23 = vld [vmem:[%s0 + $0x60] sm:$0xff]
  %v24 = vld [vmem:[%s0 + $0x68] sm:$0xff]
  %v25 = vld [vmem:[%s0 + $0x70] sm:$0xff]
  %v26 = vld [vmem:[%s0 + $0x78] sm:$0xff]
  %v27 = vld [vmem:[%s0 + $0x80] sm:$0xff]
  %v28 = vld [vmem:[%s0 + $0x88] sm:$0xff]
  %v29 = vld [vmem:[%s0 + $0x90] sm:$0xff]
  %v30 = vld [vmem:[%s0 + $0x98] sm:$0xff]
  %v31 = vld [vmem:[%s0 + $0xa0] sm:$0xff]
  %v32 = vld [vmem:[%s0 + $0xa8] sm:$0xff]
  %v33 = vld [vmem:[%s0 + $0xb0] sm:$0xff]
  %v34 = vld [vmem:[%s0 + $0xb8] sm:$0xff]
  %v35 = vld [vmem:[%s0 + $0xc0] sm:$0xff]
  %v36 = vld [vmem:[%s0 + $0xc8] sm:$0xff]
  %v37 = vld [vmem:[%s0 + $0xd0] sm:$0xff]
  %v38 = vld [vmem:[%s0 + $0xd8] sm:$0xff]
  %v39 = vld [vmem:[%s0 + $0xe0] sm:$0xff]
  %v40 = vld [vmem:[%s0 + $0xe8] sm:$0xff]
  %v41 = vld [vmem:[%s0 + $0xf0] sm:$0xff]
  %v42 = vld [vmem:[%s0 + $0xf8] sm:$0xff]
  %v43 = vld [vmem:[%s1] sm:$0x1]
  %v44 = vld [vmem:[%s1 + $0x1] sm:$0x1]
  %v45 = vld [vmem:[%s1 + $0x2] sm:$0x1]
  %v46 = vld [vmem:[%s1 + $0x3] sm:$0x1]
  %v47 = vld [vmem:[%s1 + $0x4] sm:$0x1]
  %v48 = vld [vmem:[%s1 + $0x5] sm:$0x1]
  %v49 = vld [vmem:[%s1 + $0x6] sm:$0x1]
  %v50 = vld [vmem:[%s1 + $0x7] sm:$0x1]
  %vm51 = vcmask 64512
  %v52 = vsel %vm51, %v11, -inf
  %53 = vmax.xlane.f32.xlu0 %v52
  %v54 = vpop.xlane.xlu0 %53
  %v55 = vsel %vm51, %v12, -inf
  %56 = vmax.xlane.f32.xlu0 %v55
  %v57 = vpop.xlane.xlu0 %56
  %v58 = vsel %vm51, %v13, -inf
  %59 = vmax.xlane.f32.xlu0 %v58
  %v60 = vpop.xlane.xlu0 %59
  %v61 = vsel %vm51, %v14, -inf
  %62 = vmax.xlane.f32.xlu0 %v61
  %v63 = vpop.xlane.xlu0 %62
  %v64 = vsel %vm51, %v15, -inf
  %65 = vmax.xlane.f32.xlu0 %v64
  %v66 = vpop.xlane.xlu0 %65
  %v67 = vsel %vm51, %v16, -inf
  %68 = vmax.xlane.f32.xlu0 %v67
  %v69 = vpop.xlane.xlu0 %68
  %v70 = vsel %vm51, %v17, -inf
  %71 = vmax.xlane.f32.xlu0 %v70
  %v72 = vpop.xlane.xlu0 %71
  %v73 = vsel %vm51, %v18, -inf
  %74 = vmax.xlane.f32.xlu0 %v73
  %v75 = vpop.xlane.xlu0 %74
  %v76 = vsel %vm51, %v19, -inf
  %77 = vmax.xlane.f32.xlu0 %v76
  %v78 = vpop.xlane.xlu0 %77
  %v79 = vsel %vm51, %v20, -inf
  %80 = vmax.xlane.f32.xlu0 %v79
  %v81 = vpop.xlane.xlu0 %80
  %v82 = vsel %vm51, %v21, -inf
  %83 = vmax.xlane.f32.xlu0 %v82
  %v84 = vpop.xlane.xlu0 %83
  %v85 = vsel %vm51, %v22, -inf
  %86 = vmax.xlane.f32.xlu0 %v85
  %v87 = vpop.xlane.xlu0 %86
  %v88 = vsel %vm51, %v23, -inf
  %89 = vmax.xlane.f32.xlu0 %v88
  %v90 = vpop.xlane.xlu0 %89
  %v91 = vsel %vm51, %v24, -inf
  %92 = vmax.xlane.f32.xlu0 %v91
  %v93 = vpop.xlane.xlu0 %92
  %v94 = vsel %vm51, %v25, -inf
  %95 = vmax.xlane.f32.xlu0 %v94
  %v96 = vpop.xlane.xlu0 %95
  %v97 = vsel %vm51, %v26, -inf
  %98 = vmax.xlane.f32.xlu0 %v97
  %v99 = vpop.xlane.xlu0 %98
  %v100 = vsel %vm51, %v27, -inf
  %101 = vmax.xlane.f32.xlu0 %v100
  %v102 = vpop.xlane.xlu0 %101
  %v103 = vsel %vm51, %v28, -inf
  %104 = vmax.xlane.f32.xlu0 %v103
  %v105 = vpop.xlane.xlu0 %104
  %v106 = vsel %vm51, %v29, -inf
  %107 = vmax.xlane.f32.xlu0 %v106
  %v108 = vpop.xlane.xlu0 %107
  %v109 = vsel %vm51, %v30, -inf
  %110 = vmax.xlane.f32.xlu0 %v109
  %v111 = vpop.xlane.xlu0 %110
  %v112 = vsel %vm51, %v31, -inf
  %113 = vmax.xlane.f32.xlu0 %v112
  %v114 = vpop.xlane.xlu0 %113
  %v115 = vsel %vm51, %v32, -inf
  %116 = vmax.xlane.f32.xlu0 %v115
  %v117 = vpop.xlane.xlu0 %116
  %v118 = vsel %vm51, %v33, -inf
  %119 = vmax.xlane.f32.xlu0 %v118
  %v120 = vpop.xlane.xlu0 %119
  %v121 = vsel %vm51, %v34, -inf
  %122 = vmax.xlane.f32.xlu0 %v121
  %v123 = vpop.xlane.xlu0 %122
  %v124 = vsel %vm51, %v35, -inf
  %125 = vmax.xlane.f32.xlu0 %v124
  %v126 = vpop.xlane.xlu0 %125
  %v127 = vsel %vm51, %v36, -inf
  %128 = vmax.xlane.f32.xlu0 %v127
  %v129 = vpop.xlane.xlu0 %128
  %v130 = vsel %vm51, %v37, -inf
  %131 = vmax.xlane.f32.xlu0 %v130
  %v132 = vpop.xlane.xlu0 %131
  %v133 = vsel %vm51, %v38, -inf
  %134 = vmax.xlane.f32.xlu0 %v133
  %v135 = vpop.xlane.xlu0 %134
  %v136 = vsel %vm51, %v39, -inf
  %137 = vmax.xlane.f32.xlu0 %v136
  %v138 = vpop.xlane.xlu0 %137
  %v139 = vsel %vm51, %v40, -inf
  %140 = vmax.xlane.f32.xlu0 %v139
  %v141 = vpop.xlane.xlu0 %140
  %v142 = vsel %vm51, %v41, -inf
  %143 = vmax.xlane.f32.xlu0 %v142
  %v144 = vpop.xlane.xlu0 %143
  %v145 = vsel %vm51, %v42, -inf
  %146 = vmax.xlane.f32.xlu0 %v145
  %v147 = vpop.xlane.xlu0 %146
  %v148 = vsub.f32 %v11, %v54
  %v149 = vsub.f32 %v12, %v57
  %v150 = vsub.f32 %v13, %v60
  %v151 = vsub.f32 %v14, %v63
  %v152 = vsub.f32 %v15, %v66
  %v153 = vsub.f32 %v16, %v69
  %v154 = vsub.f32 %v17, %v72
  %v155 = vsub.f32 %v18, %v75
  %v156 = vsub.f32 %v19, %v78
  %v157 = vsub.f32 %v20, %v81
  %v158 = vsub.f32 %v21, %v84
  %v159 = vsub.f32 %v22, %v87
  %v160 = vsub.f32 %v23, %v90
  %v161 = vsub.f32 %v24, %v93
  %v162 = vsub.f32 %v25, %v96
  %v163 = vsub.f32 %v26, %v99
  %v164 = vsub.f32 %v27, %v102
  %v165 = vsub.f32 %v28, %v105
  %v166 = vsub.f32 %v29, %v108
  %v167 = vsub.f32 %v30, %v111
  %v168 = vsub.f32 %v31, %v114
  %v169 = vsub.f32 %v32, %v117
  %v170 = vsub.f32 %v33, %v120
  %v171 = vsub.f32 %v34, %v123
  %v172 = vsub.f32 %v35, %v126
  %v173 = vsub.f32 %v36, %v129
  %v174 = vsub.f32 %v37, %v132
  %v175 = vsub.f32 %v38, %v135
  %v176 = vsub.f32 %v39, %v138
  %v177 = vsub.f32 %v40, %v141
  %v178 = vsub.f32 %v41, %v144
  %v179 = vsub.f32 %v42, %v147
  %v180 = vmul.f32 %v148, 1.442695
  %v181 = vpow.pop %v180
  %v182 = vmul.f32 %v149, 1.442695
  %v183 = vpow.pop %v182
  %v184 = vmul.f32 %v150, 1.442695
  %v185 = vpow.pop %v184
  %v186 = vmul.f32 %v151, 1.442695
  %v187 = vpow.pop %v186
  %v188 = vmul.f32 %v152, 1.442695
  %v189 = vpow.pop %v188
  %v190 = vmul.f32 %v153, 1.442695
  %v191 = vpow.pop %v190
  %v192 = vmul.f32 %v154, 1.442695
  %v193 = vpow.pop %v192
  %v194 = vmul.f32 %v155, 1.442695
  %v195 = vpow.pop %v194
  %v196 = vmul.f32 %v156, 1.442695
  %v197 = vpow.pop %v196
  %v198 = vmul.f32 %v157, 1.442695
  %v199 = vpow.pop %v198
  %v200 = vmul.f32 %v158, 1.442695
  %v201 = vpow.pop %v200
  %v202 = vmul.f32 %v159, 1.442695
  %v203 = vpow.pop %v202
  %v204 = vmul.f32 %v160, 1.442695
  %v205 = vpow.pop %v204
  %v206 = vmul.f32 %v161, 1.442695
  %v207 = vpow.pop %v206
  %v208 = vmul.f32 %v162, 1.442695
  %v209 = vpow.pop %v208
  %v210 = vmul.f32 %v163, 1.442695
  %v211 = vpow.pop %v210
  %v212 = vmul.f32 %v164, 1.442695
  %v213 = vpow.pop %v212
  %v214 = vmul.f32 %v165, 1.442695
  %v215 = vpow.pop %v214
  %v216 = vmul.f32 %v166, 1.442695
  %v217 = vpow.pop %v216
  %v218 = vmul.f32 %v167, 1.442695
  %v219 = vpow.pop %v218
  %v220 = vmul.f32 %v168, 1.442695
  %v221 = vpow.pop %v220
  %v222 = vmul.f32 %v169, 1.442695
  %v223 = vpow.pop %v222
  %v224 = vmul.f32 %v170, 1.442695
  %v225 = vpow.pop %v224
  %v226 = vmul.f32 %v171, 1.442695
  %v227 = vpow.pop %v226
  %v228 = vmul.f32 %v172, 1.442695
  %v229 = vpow.pop %v228
  %v230 = vmul.f32 %v173, 1.442695
  %v231 = vpow.pop %v230
  %v232 = vmul.f32 %v174, 1.442695
  %v233 = vpow.pop %v232
  %v234 = vmul.f32 %v175, 1.442695
  %v235 = vpow.pop %v234
  %v236 = vmul.f32 %v176, 1.442695
  %v237 = vpow.pop %v236
  %v238 = vmul.f32 %v177, 1.442695
  %v239 = vpow.pop %v238
  %v240 = vmul.f32 %v178, 1.442695
  %v241 = vpow.pop %v240
  %v242 = vmul.f32 %v179, 1.442695
  %v243 = vpow.pop %v242
  %v244 = vsel %vm51, %v181, 0.0
  %245 = vadd.xlane.f32.xlu0 %v244
  %v246 = vpop.xlane.xlu0 %245
  %v247 = vsel %vm51, %v183, 0.0
  %248 = vadd.xlane.f32.xlu0 %v247
  %v249 = vpop.xlane.xlu0 %248
  %v250 = vsel %vm51, %v185, 0.0
  %251 = vadd.xlane.f32.xlu0 %v250
  %v252 = vpop.xlane.xlu0 %251
  %v253 = vsel %vm51, %v187, 0.0
  %254 = vadd.xlane.f32.xlu0 %v253
  %v255 = vpop.xlane.xlu0 %254
  %v256 = vsel %vm51, %v189, 0.0
  %257 = vadd.xlane.f32.xlu0 %v256
  %v258 = vpop.xlane.xlu0 %257
  %v259 = vsel %vm51, %v191, 0.0
  %260 = vadd.xlane.f32.xlu0 %v259
  %v261 = vpop.xlane.xlu0 %260
  %v262 = vsel %vm51, %v193, 0.0
  %263 = vadd.xlane.f32.xlu0 %v262
  %v264 = vpop.xlane.xlu0 %263
  %v265 = vsel %vm51, %v195, 0.0
  %266 = vadd.xlane.f32.xlu0 %v265
  %v267 = vpop.xlane.xlu0 %266
  %v268 = vsel %vm51, %v197, 0.0
  %269 = vadd.xlane.f32.xlu0 %v268
  %v270 = vpop.xlane.xlu0 %269
  %v271 = vsel %vm51, %v199, 0.0
  %272 = vadd.xlane.f32.xlu0 %v271
  %v273 = vpop.xlane.xlu0 %272
  %v274 = vsel %vm51, %v201, 0.0
  %275 = vadd.xlane.f32.xlu0 %v274
  %v276 = vpop.xlane.xlu0 %275
  %v277 = vsel %vm51, %v203, 0.0
  %278 = vadd.xlane.f32.xlu0 %v277
  %v279 = vpop.xlane.xlu0 %278
  %v280 = vsel %vm51, %v205, 0.0
  %281 = vadd.xlane.f32.xlu0 %v280
  %v282 = vpop.xlane.xlu0 %281
  %v283 = vsel %vm51, %v207, 0.0
  %284 = vadd.xlane.f32.xlu0 %v283
  %v285 = vpop.xlane.xlu0 %284
  %v286 = vsel %vm51, %v209, 0.0
  %287 = vadd.xlane.f32.xlu0 %v286
  %v288 = vpop.xlane.xlu0 %287
  %v289 = vsel %vm51, %v211, 0.0
  %290 = vadd.xlane.f32.xlu0 %v289
  %v291 = vpop.xlane.xlu0 %290
  %v292 = vsel %vm51, %v213, 0.0
  %293 = vadd.xlane.f32.xlu0 %v292
  %v294 = vpop.xlane.xlu0 %293
  %v295 = vsel %vm51, %v215, 0.0
  %296 = vadd.xlane.f32.xlu0 %v295
  %v297 = vpop.xlane.xlu0 %296
  %v298 = vsel %vm51, %v217, 0.0
  %299 = vadd.xlane.f32.xlu0 %v298
  %v300 = vpop.xlane.xlu0 %299
  %v301 = vsel %vm51, %v219, 0.0
  %302 = vadd.xlane.f32.xlu0 %v301
  %v303 = vpop.xlane.xlu0 %302
  %v304 = vsel %vm51, %v221, 0.0
  %305 = vadd.xlane.f32.xlu0 %v304
  %v306 = vpop.xlane.xlu0 %305
  %v307 = vsel %vm51, %v223, 0.0
  %308 = vadd.xlane.f32.xlu0 %v307
  %v309 = vpop.xlane.xlu0 %308
  %v310 = vsel %vm51, %v225, 0.0
  %311 = vadd.xlane.f32.xlu0 %v310
  %v312 = vpop.xlane.xlu0 %311
  %v313 = vsel %vm51, %v227, 0.0
  %314 = vadd.xlane.f32.xlu0 %v313
  %v315 = vpop.xlane.xlu0 %314
  %v316 = vsel %vm51, %v229, 0.0
  %317 = vadd.xlane.f32.xlu0 %v316
  %v318 = vpop.xlane.xlu0 %317
  %v319 = vsel %vm51, %v231, 0.0
  %320 = vadd.xlane.f32.xlu0 %v319
  %v321 = vpop.xlane.xlu0 %320
  %v322 = vsel %vm51, %v233, 0.0
  %323 = vadd.xlane.f32.xlu0 %v322
  %v324 = vpop.xlane.xlu0 %323
  %v325 = vsel %vm51, %v235, 0.0
  %326 = vadd.xlane.f32.xlu0 %v325
  %v327 = vpop.xlane.xlu0 %326
  %v328 = vsel %vm51, %v237, 0.0
  %329 = vadd.xlane.f32.xlu0 %v328
  %v330 = vpop.xlane.xlu0 %329
  %v331 = vsel %vm51, %v239, 0.0
  %332 = vadd.xlane.f32.xlu0 %v331
  %v333 = vpop.xlane.xlu0 %332
  %v334 = vsel %vm51, %v241, 0.0
  %335 = vadd.xlane.f32.xlu0 %v334
  %v336 = vpop.xlane.xlu0 %335
  %v337 = vsel %vm51, %v243, 0.0
  %338 = vadd.xlane.f32.xlu0 %v337
  %v339 = vpop.xlane.xlu0 %338
  %v340 = vlog2.pop %v246
  %v341 = vmul.f32 %v340, 0.6931472
  %v342 = vlog2.pop %v249
  %v343 = vmul.f32 %v342, 0.6931472
  %v344 = vlog2.pop %v252
  %v345 = vmul.f32 %v344, 0.6931472
  %v346 = vlog2.pop %v255
  %v347 = vmul.f32 %v346, 0.6931472
  %v348 = vlog2.pop %v258
  %v349 = vmul.f32 %v348, 0.6931472
  %v350 = vlog2.pop %v261
  %v351 = vmul.f32 %v350, 0.6931472
  %v352 = vlog2.pop %v264
  %v353 = vmul.f32 %v352, 0.6931472
  %v354 = vlog2.pop %v267
  %v355 = vmul.f32 %v354, 0.6931472
  %v356 = vlog2.pop %v270
  %v357 = vmul.f32 %v356, 0.6931472
  %v358 = vlog2.pop %v273
  %v359 = vmul.f32 %v358, 0.6931472
  %v360 = vlog2.pop %v276
  %v361 = vmul.f32 %v360, 0.6931472
  %v362 = vlog2.pop %v279
  %v363 = vmul.f32 %v362, 0.6931472
  %v364 = vlog2.pop %v282
  %v365 = vmul.f32 %v364, 0.6931472
  %v366 = vlog2.pop %v285
  %v367 = vmul.f32 %v366, 0.6931472
  %v368 = vlog2.pop %v288
  %v369 = vmul.f32 %v368, 0.6931472
  %v370 = vlog2.pop %v291
  %v371 = vmul.f32 %v370, 0.6931472
  %v372 = vlog2.pop %v294
  %v373 = vmul.f32 %v372, 0.6931472
  %v374 = vlog2.pop %v297
  %v375 = vmul.f32 %v374, 0.6931472
  %v376 = vlog2.pop %v300
  %v377 = vmul.f32 %v376, 0.6931472
  %v378 = vlog2.pop %v303
  %v379 = vmul.f32 %v378, 0.6931472
  %v380 = vlog2.pop %v306
  %v381 = vmul.f32 %v380, 0.6931472
  %v382 = vlog2.pop %v309
  %v383 = vmul.f32 %v382, 0.6931472
  %v384 = vlog2.pop %v312
  %v385 = vmul.f32 %v384, 0.6931472
  %v386 = vlog2.pop %v315
  %v387 = vmul.f32 %v386, 0.6931472
  %v388 = vlog2.pop %v318
  %v389 = vmul.f32 %v388, 0.6931472
  %v390 = vlog2.pop %v321
  %v391 = vmul.f32 %v390, 0.6931472
  %v392 = vlog2.pop %v324
  %v393 = vmul.f32 %v392, 0.6931472
  %v394 = vlog2.pop %v327
  %v395 = vmul.f32 %v394, 0.6931472
  %v396 = vlog2.pop %v330
  %v397 = vmul.f32 %v396, 0.6931472
  %v398 = vlog2.pop %v333
  %v399 = vmul.f32 %v398, 0.6931472
  %v400 = vlog2.pop %v336
  %v401 = vmul.f32 %v400, 0.6931472
  %v402 = vlog2.pop %v339
  %v403 = vmul.f32 %v402, 0.6931472
  %v404 = vadd.f32 %v54, %v341
  %v405 = vadd.f32 %v57, %v343
  %v406 = vadd.f32 %v60, %v345
  %v407 = vadd.f32 %v63, %v347
  %v408 = vadd.f32 %v66, %v349
  %v409 = vadd.f32 %v69, %v351
  %v410 = vadd.f32 %v72, %v353
  %v411 = vadd.f32 %v75, %v355
  %v412 = vadd.f32 %v78, %v357
  %v413 = vadd.f32 %v81, %v359
  %v414 = vadd.f32 %v84, %v361
  %v415 = vadd.f32 %v87, %v363
  %v416 = vadd.f32 %v90, %v365
  %v417 = vadd.f32 %v93, %v367
  %v418 = vadd.f32 %v96, %v369
  %v419 = vadd.f32 %v99, %v371
  %v420 = vadd.f32 %v102, %v373
  %v421 = vadd.f32 %v105, %v375
  %v422 = vadd.f32 %v108, %v377
  %v423 = vadd.f32 %v111, %v379
  %v424 = vadd.f32 %v114, %v381
  %v425 = vadd.f32 %v117, %v383
  %v426 = vadd.f32 %v120, %v385
  %v427 = vadd.f32 %v123, %v387
  %v428 = vadd.f32 %v126, %v389
  %v429 = vadd.f32 %v129, %v391
  %v430 = vadd.f32 %v132, %v393
  %v431 = vadd.f32 %v135, %v395
  %v432 = vadd.f32 %v138, %v397
  %v433 = vadd.f32 %v141, %v399
  %v434 = vadd.f32 %v144, %v401
  %v435 = vadd.f32 %v147, %v403
  %v444 = vlaneseq
  %v445 = vshrl.u32 %v444, 7
  %v446 = vsub.s32 0, %v445
  %v447 = vrot.slane %v43, %v446
  %v448 = vlaneseq
  %v449 = vshrl.u32 %v448, 7
  %v450 = vsub.s32 0, %v449
  %v451 = vrot.slane %v44, %v450
  %v452 = vlaneseq
  %v453 = vshrl.u32 %v452, 7
  %v454 = vsub.s32 0, %v453
  %v455 = vrot.slane %v45, %v454
  %v456 = vlaneseq
  %v457 = vshrl.u32 %v456, 7
  %v458 = vsub.s32 0, %v457
  %v459 = vrot.slane %v46, %v458
  %v460 = vlaneseq
  %v461 = vshrl.u32 %v460, 7
  %v462 = vsub.s32 0, %v461
  %v463 = vrot.slane %v47, %v462
  %v464 = vlaneseq
  %v465 = vshrl.u32 %v464, 7
  %v466 = vsub.s32 0, %v465
  %v467 = vrot.slane %v48, %v466
  %v468 = vlaneseq
  %v469 = vshrl.u32 %v468, 7
  %v470 = vsub.s32 0, %v469
  %v471 = vrot.slane %v49, %v470
  %v472 = vlaneseq
  %v473 = vshrl.u32 %v472, 7
  %v474 = vsub.s32 0, %v473
  %v475 = vrot.slane %v50, %v474
  %v484 = vmul.f32 %v11, %v447
  %v485 = vmul.f32 %v12, %v447
  %v486 = vmul.f32 %v13, %v447
  %v487 = vmul.f32 %v14, %v447
  %v488 = vmul.f32 %v15, %v451
  %v489 = vmul.f32 %v16, %v451
  %v490 = vmul.f32 %v17, %v451
  %v491 = vmul.f32 %v18, %v451
  %v492 = vmul.f32 %v19, %v455
  %v493 = vmul.f32 %v20, %v455
  %v494 = vmul.f32 %v21, %v455
  %v495 = vmul.f32 %v22, %v455
  %v496 = vmul.f32 %v23, %v459
  %v497 = vmul.f32 %v24, %v459
  %v498 = vmul.f32 %v25, %v459
  %v499 = vmul.f32 %v26, %v459
  %v500 = vmul.f32 %v27, %v463
  %v501 = vmul.f32 %v28, %v463
  %v502 = vmul.f32 %v29, %v463
  %v503 = vmul.f32 %v30, %v463
  %v504 = vmul.f32 %v31, %v467
  %v505 = vmul.f32 %v32, %v467
  %v506 = vmul.f32 %v33, %v467
  %v507 = vmul.f32 %v34, %v467
  %v508 = vmul.f32 %v35, %v471
  %v509 = vmul.f32 %v36, %v471
  %v510 = vmul.f32 %v37, %v471
  %v511 = vmul.f32 %v38, %v471
  %v512 = vmul.f32 %v39, %v475
  %v513 = vmul.f32 %v40, %v475
  %v514 = vmul.f32 %v41, %v475
  %v515 = vmul.f32 %v42, %v475
  %v516 = vsel %vm51, %v484, 0.0
  %517 = vadd.xlane.f32.xlu0 %v516
  %v518 = vpop.xlane.xlu0 %517
  %v519 = vsel %vm51, %v485, 0.0
  %520 = vadd.xlane.f32.xlu0 %v519
  %v521 = vpop.xlane.xlu0 %520
  %v522 = vsel %vm51, %v486, 0.0
  %523 = vadd.xlane.f32.xlu0 %v522
  %v524 = vpop.xlane.xlu0 %523
  %v525 = vsel %vm51, %v487, 0.0
  %526 = vadd.xlane.f32.xlu0 %v525
  %v527 = vpop.xlane.xlu0 %526
  %v528 = vsel %vm51, %v488, 0.0
  %529 = vadd.xlane.f32.xlu0 %v528
  %v530 = vpop.xlane.xlu0 %529
  %v531 = vsel %vm51, %v489, 0.0
  %532 = vadd.xlane.f32.xlu0 %v531
  %v533 = vpop.xlane.xlu0 %532
  %v534 = vsel %vm51, %v490, 0.0
  %535 = vadd.xlane.f32.xlu0 %v534
  %v536 = vpop.xlane.xlu0 %535
  %v537 = vsel %vm51, %v491, 0.0
  %538 = vadd.xlane.f32.xlu0 %v537
  %v539 = vpop.xlane.xlu0 %538
  %v540 = vsel %vm51, %v492, 0.0
  %541 = vadd.xlane.f32.xlu0 %v540
  %v542 = vpop.xlane.xlu0 %541
  %v543 = vsel %vm51, %v493, 0.0
  %544 = vadd.xlane.f32.xlu0 %v543
  %v545 = vpop.xlane.xlu0 %544
  %v546 = vsel %vm51, %v494, 0.0
  %547 = vadd.xlane.f32.xlu0 %v546
  %v548 = vpop.xlane.xlu0 %547
  %v549 = vsel %vm51, %v495, 0.0
  %550 = vadd.xlane.f32.xlu0 %v549
  %v551 = vpop.xlane.xlu0 %550
  %v552 = vsel %vm51, %v496, 0.0
  %553 = vadd.xlane.f32.xlu0 %v552
  %v554 = vpop.xlane.xlu0 %553
  %v555 = vsel %vm51, %v497, 0.0
  %556 = vadd.xlane.f32.xlu0 %v555
  %v557 = vpop.xlane.xlu0 %556
  %v558 = vsel %vm51, %v498, 0.0
  %559 = vadd.xlane.f32.xlu0 %v558
  %v560 = vpop.xlane.xlu0 %559
  %v561 = vsel %vm51, %v499, 0.0
  %562 = vadd.xlane.f32.xlu0 %v561
  %v563 = vpop.xlane.xlu0 %562
  %v564 = vsel %vm51, %v500, 0.0
  %565 = vadd.xlane.f32.xlu0 %v564
  %v566 = vpop.xlane.xlu0 %565
  %v567 = vsel %vm51, %v501, 0.0
  %568 = vadd.xlane.f32.xlu0 %v567
  %v569 = vpop.xlane.xlu0 %568
  %v570 = vsel %vm51, %v502, 0.0
  %571 = vadd.xlane.f32.xlu0 %v570
  %v572 = vpop.xlane.xlu0 %571
  %v573 = vsel %vm51, %v503, 0.0
  %574 = vadd.xlane.f32.xlu0 %v573
  %v575 = vpop.xlane.xlu0 %574
  %v576 = vsel %vm51, %v504, 0.0
  %577 = vadd.xlane.f32.xlu0 %v576
  %v578 = vpop.xlane.xlu0 %577
  %v579 = vsel %vm51, %v505, 0.0
  %580 = vadd.xlane.f32.xlu0 %v579
  %v581 = vpop.xlane.xlu0 %580
  %v582 = vsel %vm51, %v506, 0.0
  %583 = vadd.xlane.f32.xlu0 %v582
  %v584 = vpop.xlane.xlu0 %583
  %v585 = vsel %vm51, %v507, 0.0
  %586 = vadd.xlane.f32.xlu0 %v585
  %v587 = vpop.xlane.xlu0 %586
  %v588 = vsel %vm51, %v508, 0.0
  %589 = vadd.xlane.f32.xlu0 %v588
  %v590 = vpop.xlane.xlu0 %589
  %v591 = vsel %vm51, %v509, 0.0
  %592 = vadd.xlane.f32.xlu0 %v591
  %v593 = vpop.xlane.xlu0 %592
  %v594 = vsel %vm51, %v510, 0.0
  %595 = vadd.xlane.f32.xlu0 %v594
  %v596 = vpop.xlane.xlu0 %595
  %v597 = vsel %vm51, %v511, 0.0
  %598 = vadd.xlane.f32.xlu0 %v597
  %v599 = vpop.xlane.xlu0 %598
  %v600 = vsel %vm51, %v512, 0.0
  %601 = vadd.xlane.f32.xlu0 %v600
  %v602 = vpop.xlane.xlu0 %601
  %v603 = vsel %vm51, %v513, 0.0
  %604 = vadd.xlane.f32.xlu0 %v603
  %v605 = vpop.xlane.xlu0 %604
  %v606 = vsel %vm51, %v514, 0.0
  %607 = vadd.xlane.f32.xlu0 %v606
  %v608 = vpop.xlane.xlu0 %607
  %v609 = vsel %vm51, %v515, 0.0
  %610 = vadd.xlane.f32.xlu0 %v609
  %v611 = vpop.xlane.xlu0 %610
  %v612 = vsub.f32 %v404, %v518
  %v613 = vsub.f32 %v405, %v521
  %v614 = vsub.f32 %v406, %v524
  %v615 = vsub.f32 %v407, %v527
  %v616 = vsub.f32 %v408, %v530
  %v617 = vsub.f32 %v409, %v533
  %v618 = vsub.f32 %v410, %v536
  %v619 = vsub.f32 %v411, %v539
  %v620 = vsub.f32 %v412, %v542
  %v621 = vsub.f32 %v413, %v545
  %v622 = vsub.f32 %v414, %v548
  %v623 = vsub.f32 %v415, %v551
  %v624 = vsub.f32 %v416, %v554
  %v625 = vsub.f32 %v417, %v557
  %v626 = vsub.f32 %v418, %v560
  %v627 = vsub.f32 %v419, %v563
  %v628 = vsub.f32 %v420, %v566
  %v629 = vsub.f32 %v421, %v569
  %v630 = vsub.f32 %v422, %v572
  %v631 = vsub.f32 %v423, %v575
  %v632 = vsub.f32 %v424, %v578
  %v633 = vsub.f32 %v425, %v581
  %v634 = vsub.f32 %v426, %v584
  %v635 = vsub.f32 %v427, %v587
  %v636 = vsub.f32 %v428, %v590
  %v637 = vsub.f32 %v429, %v593
  %v638 = vsub.f32 %v430, %v596
  %v639 = vsub.f32 %v431, %v599
  %v640 = vsub.f32 %v432, %v602
  %v641 = vsub.f32 %v433, %v605
  %v642 = vsub.f32 %v434, %v608
  %v643 = vsub.f32 %v435, %v611
  %v644 = vadd.f32 %v612, %v616
  %v645 = vadd.f32 %v644, %v620
  %v646 = vadd.f32 %v645, %v624
  %v647 = vadd.f32 %v646, %v628
  %v648 = vadd.f32 %v647, %v632
  %v649 = vadd.f32 %v648, %v636
  %v650 = vadd.f32 %v649, %v640
  %v651 = vadd.f32 %v613, %v617
  %v652 = vadd.f32 %v651, %v621
  %v653 = vadd.f32 %v652, %v625
  %v654 = vadd.f32 %v653, %v629
  %v655 = vadd.f32 %v654, %v633
  %v656 = vadd.f32 %v655, %v637
  %v657 = vadd.f32 %v656, %v641
  %v658 = vadd.f32 %v614, %v618
  %v659 = vadd.f32 %v658, %v622
  %v660 = vadd.f32 %v659, %v626
  %v661 = vadd.f32 %v660, %v630
  %v662 = vadd.f32 %v661, %v634
  %v663 = vadd.f32 %v662, %v638
  %v664 = vadd.f32 %v663, %v642
  %v665 = vadd.f32 %v615, %v619
  %v666 = vadd.f32 %v665, %v623
  %v667 = vadd.f32 %v666, %v627
  %v668 = vadd.f32 %v667, %v631
  %v669 = vadd.f32 %v668, %v635
  %v670 = vadd.f32 %v669, %v639
  %v671 = vadd.f32 %v670, %v643
  %v672 = vmul.f32 %v650, 0.125
  %v673 = vmul.f32 %v657, 0.125
  %v674 = vmul.f32 %v664, 0.125
  %v675 = vmul.f32 %v671, 0.125
  %v676 = vmin.f32 %v672, %v673
  %v677 = vmin.f32 %v674, %v675
  %v678 = vmin.f32 %v676, %v677
  %v679 = vrot.slane %v678, 4
  %v680 = vmin.f32 %v678, %v679
  %v681 = vrot.slane %v680, 2
  %v682 = vmin.f32 %v680, %v681
  %v683 = vrot.slane %v682, 1
  %v684 = vmin.f32 %v682, %v683
  %s685 = vtos %v684
  %v686 = vstv %s685
  %v687 = vmax.f32 %v672, %v673
  %v688 = vmax.f32 %v674, %v675
  %v689 = vmax.f32 %v687, %v688
  %v690 = vrot.slane %v689, 4
  %v691 = vmax.f32 %v689, %v690
  %v692 = vrot.slane %v691, 2
  %v693 = vmax.f32 %v691, %v692
  %v694 = vrot.slane %v693, 1
  %v695 = vmax.f32 %v693, %v694
  %s696 = vtos %v695
  %v697 = vstv %s696
  %v698 = vsub.f32 %v672, %v686
  %v699 = vsub.f32 %v673, %v686
  %v700 = vsub.f32 %v674, %v686
  %v701 = vsub.f32 %v675, %v686
  %v702 = vsub.f32 %v697, %v686
  %v703 = vadd.f32 %v702, 1e-06
  %v704 = vrcp.pop %v703
  %v705 = vmul.f32 %v698, %v704
  %v706 = vmul.f32 %v699, %v704
  %v707 = vmul.f32 %v700, %v704
  %v708 = vmul.f32 %v701, %v704
  %vm709 = vcmask 7168
  %710 = vst.msk [vmem:[%s2] sm:$0xff] %vm709, %v705
  %711 = vst.msk [vmem:[%s2 + $0x8] sm:$0xff] %vm709, %v706
  %712 = vst.msk [vmem:[%s2 + $0x10] sm:$0xff] %vm709, %v707
  %713 = vst.msk [vmem:[%s2 + $0x18] sm:$0xff] %vm709, %v708
  // Predicated region
  $region10: #{loss_landscape_observer.3} parent=0 // pred_check
    _
  $region11: #{loss_landscape_observer.3} parent=0 // pred_check_branch
    %715 = sbr.rel (0) target = $region13
  $region12: #{loss_landscape_observer.3} parent=0 // pred_region
    _
  $region13: #{loss_landscape_observer.3} parent=0 // pred_fallthru
    _
  // Predicated region
  $region14: #{loss_landscape_observer.3} parent=0 // pred_check
    _
  $region15: #{loss_landscape_observer.3} parent=0 // pred_check_branch
    %717 = sbr.rel (0) target = $region17
  $region16: #{loss_landscape_observer.3} parent=0 // pred_region
    _
  $region17: #{loss_landscape_observer.3} parent=0 // pred_fallthru
    _

</llo_original>
